<compile_context>
chip_gen: v6e
topology: v6e:2x2x1
jax: 0.10.0
libtpu: 0.0.40
codegen_flags: <defaults>
</compile_context>

<pallas_src>
import jax
import jax.numpy as jnp
from jax import lax
from jax.experimental import pallas as pl
from jax.experimental.pallas import tpu as pltpu

EPS = 1e-5
VMEM = pl.BlockSpec(memory_space=pltpu.MemorySpace.VMEM)
SMEM = pl.BlockSpec(memory_space=pltpu.MemorySpace.SMEM)


# --------------------------------------------------------------------------
# Fused Pallas kernel
# --------------------------------------------------------------------------
def _make_fused_kernel(in_dim, ho, wo, w_in, m):
    """Kernel factory closing over static shape constants."""

    def kernel(alpha_ref, hpos_ref, wpos_ref, cand_ref,
               w0_ref, s0_ref, w1_ref, s1_ref, w2_ref, s2_ref, pad_ref,
               out_ref, idx_ref):
        a0 = alpha_ref[0]
        a1 = alpha_ref[1]
        a2 = alpha_ref[2]
        a3 = alpha_ref[3]

        hpos = hpos_ref[...]                 # (1, M) int32: output row ho
        wpos = wpos_ref[...]                 # (1, M) int32: output col wo

        # Load the four 2x2-window candidates once; reused by maxpool AND conv0.
        cands = [cand_ref[k] for k in range(4)]      # each (Cin, M)

        # ---------------- maxpool 2x2 with PyTorch flat indices ----------------
        base = 2 * w_in * hpos + 2 * wpos            # (1, M) int32
        val = cands[0]
        idx = jnp.broadcast_to(base, (in_dim, m))
        # Scan order (kh,kw)=(0,0),(0,1),(1,0),(1,1); strict '>' keeps first max.
        for k, off in ((1, 1), (2, w_in), (3, w_in + 1)):
            c = cands[k]
            better = c > val
            val = jnp.where(better, c, val)
            idx = jnp.where(better, base + off, idx)

        # ---------------- conv0 (2x2 stride 2) + folded BN + PReLU -------------
        acc0 = jnp.dot(w0_ref[0], cands[0], preferred_element_type=jnp.float32)
        for k in range(1, 4):
            acc0 = acc0 + jnp.dot(w0_ref[k], cands[k],
                                  preferred_element_type=jnp.float32)
        p0 = acc0 + s0_ref[...]                      # (mid, M) + (mid, 1)
        p0 = jnp.where(p0 >= 0.0, p0, a0 * p0)

        # ---------------- conv1 (3x3, pad 1) + folded BN + PReLU ---------------
        # Shifted neighbours are produced with lane rotations of p0 plus border
        # masks (zero padding); rolls that wrap across image/batch boundaries are
        # always masked out, so the result is exact.
        acc1 = None
        for k in range(9):
            dh, dw = k // 3, k % 3
            s = (dh - 1) * wo + (dw - 1)             # flat lane offset of the tap
            shifted = p0 if s == 0 else pltpu.roll(p0, (-s) % m, 1)
            conds = []
            if dh == 0:
                conds.append(hpos >= 1)
            elif dh == 2:
                conds.append(hpos < ho - 1)
            if dw == 0:
                conds.append(wpos >= 1)
            elif dw == 2:
                conds.append(wpos < wo - 1)
            if conds:
                mask = conds[0]
                for cnd in conds[1:]:
                    mask = mask & cnd
                shifted = jnp.where(mask, shifted, 0.0)
            term = jnp.dot(w1_ref[k], shifted, preferred_element_type=jnp.float32)
            acc1 = term if acc1 is None else acc1 + term
        p1 = acc1 + s1_ref[...]
        p1 = jnp.where(p1 >= 0.0, p1, a1 * p1)

        # ---------------- block2 (1x1 conv) + folded BN + PReLU ----------------
        p2 = jnp.dot(w2_ref[...], p1, preferred_element_type=jnp.float32) + s2_ref[...]
        p2 = jnp.where(p2 >= 0.0, p2, a2 * p2)
        # TODO(synk): nn.Dropout(p=0.01) implemented with eval-mode (identity) semantics.

        # ---------------- channel-pad pooled + residual add + PReLU3 -----------
        pooled_pad = jnp.dot(pad_ref[...], val, preferred_element_type=jnp.float32)
        res = pooled_pad + p2
        out_ref[...] = jnp.where(res >= 0.0, res, a3 * res)
        idx_ref[...] = idx

    return kernel


# --------------------------------------------------------------------------
# Wrapper
# --------------------------------------------------------------------------
def bottleneck_downsampling(x_nchw, params, in_dim, projection_factor, out_dim):
    """Pallas forward. x_nchw: (N, in_dim, H, W) f32. Returns (out, indices) NCHW."""
    n, c, h, w = x_nchw.shape
    assert c == in_dim and h % 2 == 0 and w % 2 == 0 and out_dim >= in_dim
    mid = in_dim // projection_factor
    ho, wo = h // 2, w // 2
    m = n * ho * wo

    x = x_nchw.astype(jnp.float32)

    # Single im2col slab for the 2x2/stride-2 window: (k=kh*2+kw, channel, m=(n,ho,wo)).
    xr = x.reshape(n, in_dim, ho, 2, wo, 2)
    cand = jnp.transpose(xr, (3, 5, 1, 0, 2, 4)).reshape(4, in_dim, m)

    # Per-output-position spatial coordinates (maxpool indices + 3x3 border masks).
    hpos = jnp.broadcast_to(
        jnp.arange(ho, dtype=jnp.int32)[None, :, None], (n, ho, wo)).reshape(1, m)
    wpos = jnp.broadcast_to(
        jnp.arange(wo, dtype=jnp.int32)[None, None, :], (n, ho, wo)).reshape(1, m)

    # ---- fold eval-mode BN (+ conv bias) into weights / shifts (host side) ----
    s0 = params["bn0_gamma"] / jnp.sqrt(params["bn0_var"] + EPS)
    shift0 = params["bn0_beta"] + (params["b0"] - params["bn0_mean"]) * s0
    w0f = (jnp.transpose(params["w0"], (2, 3, 0, 1)).reshape(4, mid, in_dim)
           * s0[None, :, None])

    s1 = params["bn1_gamma"] / jnp.sqrt(params["bn1_var"] + EPS)
    shift1 = params["bn1_beta"] + (params["b1"] - params["bn1_mean"]) * s1
    w1f = (jnp.transpose(params["w1"], (2, 3, 0, 1)).reshape(9, mid, mid)
           * s1[None, :, None])

    s2 = params["bn2_gamma"] / jnp.sqrt(params["bn2_var"] + EPS)
    shift2 = params["bn2_beta"] + (params["b2"] - params["bn2_mean"]) * s2
    w2f = params["w2"].reshape(out_dim, mid) * s2[:, None]

    pad_mat = jnp.eye(out_dim, in_dim, dtype=jnp.float32)   # channel-pad via matmul
    alphas = jnp.stack([params["a0"], params["a1"],
                        params["a2"], params["a3"]]).astype(jnp.float32)

    kernel = _make_fused_kernel(in_dim, ho, wo, w, m)
    out_cm, idx_cm = pl.pallas_call(
        kernel,
        out_shape=(jax.ShapeDtypeStruct((out_dim, m), jnp.float32),
                   jax.ShapeDtypeStruct((in_dim, m), jnp.int32)),
        in_specs=[SMEM] + [VMEM] * 10,
        out_specs=(VMEM, VMEM),
    )(alphas, hpos, wpos, cand,
      w0f, shift0.reshape(mid, 1),
      w1f, shift1.reshape(mid, 1),
      w2f, shift2.reshape(out_dim, 1),
      pad_mat)

    out_nchw = out_cm.reshape(out_dim, n, ho, wo).transpose(1, 0, 2, 3)
    idx_nchw = idx_cm.reshape(in_dim, n, ho, wo).transpose(1, 0, 2, 3)
    return out_nchw, idx_nchw


# --------------------------------------------------------------------------
# Deterministic parameter init (shapes match the nn.Module __init__)
# --------------------------------------------------------------------------
def init_params(key, in_dim, projection_factor, out_dim):
    mid = in_dim // projection_factor
    ks = jax.random.split(key, 16)

    def u(k, shape, s=0.3):
        return (jax.random.uniform(k, shape, jnp.float32) - 0.5) * (2.0 * s)

    return {
        "w0": u(ks[0], (mid, in_dim, 2, 2)),      "b0": u(ks[1], (mid,)),
        "w1": u(ks[2], (mid, mid, 3, 3)),         "b1": u(ks[3], (mid,)),
        "w2": u(ks[4], (out_dim, mid, 1, 1)),     "b2": u(ks[5], (out_dim,)),
        "bn0_gamma": 1.0 + u(ks[6], (mid,), 0.1), "bn0_beta": u(ks[7], (mid,), 0.1),
        "bn0_mean": u(ks[8], (mid,), 0.1),        "bn0_var": 1.0 + jnp.abs(u(ks[8], (mid,), 0.1)),
        "bn1_gamma": 1.0 + u(ks[9], (mid,), 0.1), "bn1_beta": u(ks[10], (mid,), 0.1),
        "bn1_mean": u(ks[11], (mid,), 0.1),       "bn1_var": 1.0 + jnp.abs(u(ks[11], (mid,), 0.1)),
        "bn2_gamma": 1.0 + u(ks[12], (out_dim,), 0.1), "bn2_beta": u(ks[13], (out_dim,), 0.1),
        "bn2_mean": u(ks[14], (out_dim,), 0.1),   "bn2_var": 1.0 + jnp.abs(u(ks[14], (out_dim,), 0.1)),
        "a0": jnp.float32(0.25), "a1": jnp.float32(0.25),
        "a2": jnp.float32(0.25), "a3": jnp.float32(0.25),
    }


# --------------------------------------------------------------------------
# Pure-JAX reference (eval-mode semantics) for verification
# --------------------------------------------------------------------------
def _ref_forward(x_nchw, params, in_dim, projection_factor, out_dim):
    n, c, h, w = x_nchw.shape
    ho, wo = h // 2, w // 2

    def conv(x, wgt, b, stride, pad):
        y = lax.conv_general_dilated(x, wgt, (stride, stride), pad,
                                     dimension_numbers=("NCHW", "OIHW", "NCHW"))
        return y + b[None, :, None, None]

    def bn(x, g, bta, mu, var):
        return ((x - mu[None, :, None, None])
                / jnp.sqrt(var[None, :, None, None] + EPS)
                * g[None, :, None, None] + bta[None, :, None, None])

    def prelu(x, a):
        return jnp.where(x >= 0, x, a * x)

    xr = x_nchw.reshape(n, c, ho, 2, wo, 2)
    cands = jnp.transpose(xr, (0, 1, 2, 4, 3, 5)).reshape(n, c, ho, wo, 4)
    pooled = cands.max(axis=-1)
    arg = jnp.argmax(cands, axis=-1).astype(jnp.int32)
    hh = jnp.arange(ho, dtype=jnp.int32)[:, None]
    ww = jnp.arange(wo, dtype=jnp.int32)[None, :]
    indices = (2 * hh + arg // 2) * w + (2 * ww + arg % 2)

    c0 = conv(x_nchw, params["w0"], params["b0"], 2, "VALID")
    p0 = prelu(bn(c0, params["bn0_gamma"], params["bn0_beta"],
                  params["bn0_mean"], params["bn0_var"]), params["a0"])
    c1 = conv(p0, params["w1"], params["b1"], 1, ((1, 1), (1, 1)))
    p1 = prelu(bn(c1, params["bn1_gamma"], params["bn1_beta"],
                  params["bn1_mean"], params["bn1_var"]), params["a1"])
    c2 = conv(p1, params["w2"], params["b2"], 1, "VALID")
    p2 = prelu(bn(c2, params["bn2_gamma"], params["bn2_beta"],
                  params["bn2_mean"], params["bn2_var"]), params["a2"])
    do = p2  # dropout eval mode
    pad = jnp.zeros((n, out_dim - in_dim, ho, wo), jnp.float32)
    out = jnp.concatenate([pooled, pad], axis=1) + do
    return prelu(out, params["a3"]), indices


# --------------------------------------------------------------------------
if __name__ == "__main__":
    in_dim, projection_factor, out_dim = 4, 2, 8
    N, H, W = 2, 16, 16

    key = jax.random.PRNGKey(0)
    kx, kp = jax.random.split(key)
    x = jax.random.normal(kx, (N, in_dim, H, W), jnp.float32)
    params = init_params(kp, in_dim, projection_factor, out_dim)

    out, idx = bottleneck_downsampling(x, params, in_dim, projection_factor, out_dim)
    out = jax.block_until_ready(out)
    idx = jax.block_until_ready(idx)

    ref_out, ref_idx = _ref_forward(x, params, in_dim, projection_factor, out_dim)

    assert out.shape == (N, out_dim, H // 2, W // 2), out.shape
    assert idx.shape == (N, in_dim, H // 2, W // 2), idx.shape
    assert jnp.allclose(out, ref_out, atol=1e-3, rtol=1e-3), "output mismatch"
    assert jnp.array_equal(idx, ref_idx), "indices mismatch"

    print("KERNEL_OK")
</pallas_src>

<mosaic_0001>
module attributes {stable_mosaic.version = 11 : i64} {
  func.func @kernel(%arg0: memref<4xf32, #tpu.memory_space<smem>>, %arg1: memref<1x128xi32, #tpu.memory_space<vmem>>, %arg2: memref<1x128xi32, #tpu.memory_space<vmem>>, %arg3: memref<4x4x128xf32, #tpu.memory_space<vmem>>, %arg4: memref<4x2x4xf32, #tpu.memory_space<vmem>>, %arg5: memref<2x1xf32, #tpu.memory_space<vmem>>, %arg6: memref<9x2x2xf32, #tpu.memory_space<vmem>>, %arg7: memref<2x1xf32, #tpu.memory_space<vmem>>, %arg8: memref<8x2xf32, #tpu.memory_space<vmem>>, %arg9: memref<8x1xf32, #tpu.memory_space<vmem>>, %arg10: memref<8x4xf32, #tpu.memory_space<vmem>>, %arg11: memref<8x128xf32, #tpu.memory_space<vmem>>, %arg12: memref<4x128xi32, #tpu.memory_space<vmem>>) attributes {dimension_semantics = [], scalar_prefetch = 0 : i64, scratch_operands = 0 : i64, tpu.core_type = #tpu.core_type<tc>} {
    %c0 = arith.constant 0 : index
    %0 = memref.load %arg0[%c0] : memref<4xf32, #tpu.memory_space<smem>>
    %c1 = arith.constant 1 : index
    %1 = memref.load %arg0[%c1] : memref<4xf32, #tpu.memory_space<smem>>
    %c2 = arith.constant 2 : index
    %2 = memref.load %arg0[%c2] : memref<4xf32, #tpu.memory_space<smem>>
    %c3 = arith.constant 3 : index
    %3 = memref.load %arg0[%c3] : memref<4xf32, #tpu.memory_space<smem>>
    %c0_0 = arith.constant 0 : index
    %c0_1 = arith.constant 0 : index
    %4 = vector.load %arg1[%c0_0, %c0_1] : memref<1x128xi32, #tpu.memory_space<vmem>>, vector<1x128xi32>
    %c0_2 = arith.constant 0 : index
    %c0_3 = arith.constant 0 : index
    %5 = vector.load %arg2[%c0_2, %c0_3] : memref<1x128xi32, #tpu.memory_space<vmem>>, vector<1x128xi32>
    %c0_4 = arith.constant 0 : index
    %c0_5 = arith.constant 0 : index
    %c0_6 = arith.constant 0 : index
    %6 = vector.load %arg3[%c0_4, %c0_5, %c0_6] : memref<4x4x128xf32, #tpu.memory_space<vmem>>, vector<1x4x128xf32>
    %7 = vector.shape_cast %6 : vector<1x4x128xf32> to vector<4x128xf32>
    %c1_7 = arith.constant 1 : index
    %c0_8 = arith.constant 0 : index
    %c0_9 = arith.constant 0 : index
    %8 = vector.load %arg3[%c1_7, %c0_8, %c0_9] : memref<4x4x128xf32, #tpu.memory_space<vmem>>, vector<1x4x128xf32>
    %9 = vector.shape_cast %8 : vector<1x4x128xf32> to vector<4x128xf32>
    %c2_10 = arith.constant 2 : index
    %c0_11 = arith.constant 0 : index
    %c0_12 = arith.constant 0 : index
    %10 = vector.load %arg3[%c2_10, %c0_11, %c0_12] : memref<4x4x128xf32, #tpu.memory_space<vmem>>, vector<1x4x128xf32>
    %11 = vector.shape_cast %10 : vector<1x4x128xf32> to vector<4x128xf32>
    %c3_13 = arith.constant 3 : index
    %c0_14 = arith.constant 0 : index
    %c0_15 = arith.constant 0 : index
    %12 = vector.load %arg3[%c3_13, %c0_14, %c0_15] : memref<4x4x128xf32, #tpu.memory_space<vmem>>, vector<1x4x128xf32>
    %13 = vector.shape_cast %12 : vector<1x4x128xf32> to vector<4x128xf32>
    %c32_i32 = arith.constant 32 : i32
    %14 = vector.broadcast %c32_i32 : i32 to vector<1x128xi32>
    %15 = arith.muli %14, %4 : vector<1x128xi32>
    %c2_i32 = arith.constant 2 : i32
    %16 = vector.broadcast %c2_i32 : i32 to vector<1x128xi32>
    %17 = arith.muli %16, %5 : vector<1x128xi32>
    %18 = arith.addi %15, %17 : vector<1x128xi32>
    %19 = vector.shape_cast %18 : vector<1x128xi32> to vector<1x128xi32>
    %20 = vector.broadcast %19 : vector<1x128xi32> to vector<4x128xi32>
    %21 = arith.cmpf ogt, %9, %7 : vector<4x128xf32>
    %22 = arith.select %21, %9, %7 : vector<4x128xi1>, vector<4x128xf32>
    %c1_i32 = arith.constant 1 : i32
    %23 = vector.broadcast %c1_i32 : i32 to vector<1x128xi32>
    %24 = arith.addi %18, %23 : vector<1x128xi32>
    %25 = vector.shape_cast %24 : vector<1x128xi32> to vector<1x128xi32>
    %26 = vector.broadcast %25 : vector<1x128xi32> to vector<4x128xi32>
    %27 = arith.select %21, %26, %20 : vector<4x128xi1>, vector<4x128xi32>
    %28 = arith.cmpf ogt, %11, %22 : vector<4x128xf32>
    %29 = arith.select %28, %11, %22 : vector<4x128xi1>, vector<4x128xf32>
    %c16_i32 = arith.constant 16 : i32
    %30 = vector.broadcast %c16_i32 : i32 to vector<1x128xi32>
    %31 = arith.addi %18, %30 : vector<1x128xi32>
    %32 = vector.shape_cast %31 : vector<1x128xi32> to vector<1x128xi32>
    %33 = vector.broadcast %32 : vector<1x128xi32> to vector<4x128xi32>
    %34 = arith.select %28, %33, %27 : vector<4x128xi1>, vector<4x128xi32>
    %35 = arith.cmpf ogt, %13, %29 : vector<4x128xf32>
    %36 = arith.select %35, %13, %29 : vector<4x128xi1>, vector<4x128xf32>
    %c17_i32 = arith.constant 17 : i32
    %37 = vector.broadcast %c17_i32 : i32 to vector<1x128xi32>
    %38 = arith.addi %18, %37 : vector<1x128xi32>
    %39 = vector.shape_cast %38 : vector<1x128xi32> to vector<1x128xi32>
    %40 = vector.broadcast %39 : vector<1x128xi32> to vector<4x128xi32>
    %41 = arith.select %35, %40, %34 : vector<4x128xi1>, vector<4x128xi32>
    %c0_16 = arith.constant 0 : index
    %c0_17 = arith.constant 0 : index
    %c0_18 = arith.constant 0 : index
    %42 = vector.load %arg4[%c0_16, %c0_17, %c0_18] : memref<4x2x4xf32, #tpu.memory_space<vmem>>, vector<1x2x4xf32>
    %43 = vector.shape_cast %42 : vector<1x2x4xf32> to vector<2x4xf32>
    %cst = arith.constant dense<0.000000e+00> : vector<2x128xf32>
    %44 = tpu.matmul %43, %7, %cst {dimension_numbers = #tpu.dot_dimension_numbers<[1], [0], [0], [1], [0, 0, 1, 1], [], []>} : vector<2x4xf32>, vector<4x128xf32>, vector<2x128xf32> -> vector<2x128xf32>
    %c1_19 = arith.constant 1 : index
    %c0_20 = arith.constant 0 : index
    %c0_21 = arith.constant 0 : index
    %45 = vector.load %arg4[%c1_19, %c0_20, %c0_21] : memref<4x2x4xf32, #tpu.memory_space<vmem>>, vector<1x2x4xf32>
    %46 = vector.shape_cast %45 : vector<1x2x4xf32> to vector<2x4xf32>
    %cst_22 = arith.constant dense<0.000000e+00> : vector<2x128xf32>
    %47 = tpu.matmul %46, %9, %cst_22 {dimension_numbers = #tpu.dot_dimension_numbers<[1], [0], [0], [1], [0, 0, 1, 1], [], []>} : vector<2x4xf32>, vector<4x128xf32>, vector<2x128xf32> -> vector<2x128xf32>
    %48 = arith.addf %44, %47 : vector<2x128xf32>
    %c2_23 = arith.constant 2 : index
    %c0_24 = arith.constant 0 : index
    %c0_25 = arith.constant 0 : index
    %49 = vector.load %arg4[%c2_23, %c0_24, %c0_25] : memref<4x2x4xf32, #tpu.memory_space<vmem>>, vector<1x2x4xf32>
    %50 = vector.shape_cast %49 : vector<1x2x4xf32> to vector<2x4xf32>
    %cst_26 = arith.constant dense<0.000000e+00> : vector<2x128xf32>
    %51 = tpu.matmul %50, %11, %cst_26 {dimension_numbers = #tpu.dot_dimension_numbers<[1], [0], [0], [1], [0, 0, 1, 1], [], []>} : vector<2x4xf32>, vector<4x128xf32>, vector<2x128xf32> -> vector<2x128xf32>
    %52 = arith.addf %48, %51 : vector<2x128xf32>
    %c3_27 = arith.constant 3 : index
    %c0_28 = arith.constant 0 : index
    %c0_29 = arith.constant 0 : index
    %53 = vector.load %arg4[%c3_27, %c0_28, %c0_29] : memref<4x2x4xf32, #tpu.memory_space<vmem>>, vector<1x2x4xf32>
    %54 = vector.shape_cast %53 : vector<1x2x4xf32> to vector<2x4xf32>
    %cst_30 = arith.constant dense<0.000000e+00> : vector<2x128xf32>
    %55 = tpu.matmul %54, %13, %cst_30 {dimension_numbers = #tpu.dot_dimension_numbers<[1], [0], [0], [1], [0, 0, 1, 1], [], []>} : vector<2x4xf32>, vector<4x128xf32>, vector<2x128xf32> -> vector<2x128xf32>
    %56 = arith.addf %52, %55 : vector<2x128xf32>
    %c0_31 = arith.constant 0 : index
    %c0_32 = arith.constant 0 : index
    %57 = vector.load %arg5[%c0_31, %c0_32] : memref<2x1xf32, #tpu.memory_space<vmem>>, vector<2x1xf32>
    %58 = vector.broadcast %57 : vector<2x1xf32> to vector<2x128xf32>
    %59 = arith.addf %56, %58 : vector<2x128xf32>
    %cst_33 = arith.constant 0.000000e+00 : f32
    %60 = vector.broadcast %cst_33 : f32 to vector<2x128xf32>
    %61 = arith.cmpf oge, %59, %60 : vector<2x128xf32>
    %62 = vector.broadcast %0 : f32 to vector<2x128xf32>
    %63 = arith.mulf %62, %59 : vector<2x128xf32>
    %64 = arith.select %61, %59, %63 : vector<2x128xi1>, vector<2x128xf32>
    %c9_i32 = arith.constant 9 : i32
    %65 = tpu.dynamic_rotate %64 by %c9_i32 dim 1 : vector<2x128xf32>, i32 -> vector<2x128xf32>
    %c1_i32_34 = arith.constant 1 : i32
    %66 = vector.broadcast %c1_i32_34 : i32 to vector<1x128xi32>
    %67 = arith.cmpi sge, %4, %66 : vector<1x128xi32>
    %c1_i32_35 = arith.constant 1 : i32
    %68 = vector.broadcast %c1_i32_35 : i32 to vector<1x128xi32>
    %69 = arith.cmpi sge, %5, %68 : vector<1x128xi32>
    %70 = arith.andi %67, %69 : vector<1x128xi1>
    %cst_36 = arith.constant 0.000000e+00 : f32
    %71 = vector.shape_cast %70 : vector<1x128xi1> to vector<1x128xi1>
    %72 = vector.broadcast %71 : vector<1x128xi1> to vector<2x128xi1>
    %73 = vector.broadcast %cst_36 : f32 to vector<2x128xf32>
    %74 = arith.select %72, %65, %73 : vector<2x128xi1>, vector<2x128xf32>
    %c0_37 = arith.constant 0 : index
    %c0_38 = arith.constant 0 : index
    %c0_39 = arith.constant 0 : index
    %75 = vector.load %arg6[%c0_37, %c0_38, %c0_39] : memref<9x2x2xf32, #tpu.memory_space<vmem>>, vector<1x2x2xf32>
    %76 = vector.shape_cast %75 : vector<1x2x2xf32> to vector<2x2xf32>
    %cst_40 = arith.constant dense<0.000000e+00> : vector<2x128xf32>
    %77 = tpu.matmul %76, %74, %cst_40 {dimension_numbers = #tpu.dot_dimension_numbers<[1], [0], [0], [1], [0, 0, 1, 1], [], []>} : vector<2x2xf32>, vector<2x128xf32>, vector<2x128xf32> -> vector<2x128xf32>
    %c8_i32 = arith.constant 8 : i32
    %78 = tpu.dynamic_rotate %64 by %c8_i32 dim 1 : vector<2x128xf32>, i32 -> vector<2x128xf32>
    %c1_i32_41 = arith.constant 1 : i32
    %79 = vector.broadcast %c1_i32_41 : i32 to vector<1x128xi32>
    %80 = arith.cmpi sge, %4, %79 : vector<1x128xi32>
    %cst_42 = arith.constant 0.000000e+00 : f32
    %81 = vector.shape_cast %80 : vector<1x128xi1> to vector<1x128xi1>
    %82 = vector.broadcast %81 : vector<1x128xi1> to vector<2x128xi1>
    %83 = vector.broadcast %cst_42 : f32 to vector<2x128xf32>
    %84 = arith.select %82, %78, %83 : vector<2x128xi1>, vector<2x128xf32>
    %c1_43 = arith.constant 1 : index
    %c0_44 = arith.constant 0 : index
    %c0_45 = arith.constant 0 : index
    %85 = vector.load %arg6[%c1_43, %c0_44, %c0_45] : memref<9x2x2xf32, #tpu.memory_space<vmem>>, vector<1x2x2xf32>
    %86 = vector.shape_cast %85 : vector<1x2x2xf32> to vector<2x2xf32>
    %cst_46 = arith.constant dense<0.000000e+00> : vector<2x128xf32>
    %87 = tpu.matmul %86, %84, %cst_46 {dimension_numbers = #tpu.dot_dimension_numbers<[1], [0], [0], [1], [0, 0, 1, 1], [], []>} : vector<2x2xf32>, vector<2x128xf32>, vector<2x128xf32> -> vector<2x128xf32>
    %88 = arith.addf %77, %87 : vector<2x128xf32>
    %c7_i32 = arith.constant 7 : i32
    %89 = tpu.dynamic_rotate %64 by %c7_i32 dim 1 : vector<2x128xf32>, i32 -> vector<2x128xf32>
    %c1_i32_47 = arith.constant 1 : i32
    %90 = vector.broadcast %c1_i32_47 : i32 to vector<1x128xi32>
    %91 = arith.cmpi sge, %4, %90 : vector<1x128xi32>
    %c7_i32_48 = arith.constant 7 : i32
    %92 = vector.broadcast %c7_i32_48 : i32 to vector<1x128xi32>
    %93 = arith.cmpi slt, %5, %92 : vector<1x128xi32>
    %94 = arith.andi %91, %93 : vector<1x128xi1>
    %cst_49 = arith.constant 0.000000e+00 : f32
    %95 = vector.shape_cast %94 : vector<1x128xi1> to vector<1x128xi1>
    %96 = vector.broadcast %95 : vector<1x128xi1> to vector<2x128xi1>
    %97 = vector.broadcast %cst_49 : f32 to vector<2x128xf32>
    %98 = arith.select %96, %89, %97 : vector<2x128xi1>, vector<2x128xf32>
    %c2_50 = arith.constant 2 : index
    %c0_51 = arith.constant 0 : index
    %c0_52 = arith.constant 0 : index
    %99 = vector.load %arg6[%c2_50, %c0_51, %c0_52] : memref<9x2x2xf32, #tpu.memory_space<vmem>>, vector<1x2x2xf32>
    %100 = vector.shape_cast %99 : vector<1x2x2xf32> to vector<2x2xf32>
    %cst_53 = arith.constant dense<0.000000e+00> : vector<2x128xf32>
    %101 = tpu.matmul %100, %98, %cst_53 {dimension_numbers = #tpu.dot_dimension_numbers<[1], [0], [0], [1], [0, 0, 1, 1], [], []>} : vector<2x2xf32>, vector<2x128xf32>, vector<2x128xf32> -> vector<2x128xf32>
    %102 = arith.addf %88, %101 : vector<2x128xf32>
    %c1_i32_54 = arith.constant 1 : i32
    %103 = tpu.dynamic_rotate %64 by %c1_i32_54 dim 1 : vector<2x128xf32>, i32 -> vector<2x128xf32>
    %c1_i32_55 = arith.constant 1 : i32
    %104 = vector.broadcast %c1_i32_55 : i32 to vector<1x128xi32>
    %105 = arith.cmpi sge, %5, %104 : vector<1x128xi32>
    %cst_56 = arith.constant 0.000000e+00 : f32
    %106 = vector.shape_cast %105 : vector<1x128xi1> to vector<1x128xi1>
    %107 = vector.broadcast %106 : vector<1x128xi1> to vector<2x128xi1>
    %108 = vector.broadcast %cst_56 : f32 to vector<2x128xf32>
    %109 = arith.select %107, %103, %108 : vector<2x128xi1>, vector<2x128xf32>
    %c3_57 = arith.constant 3 : index
    %c0_58 = arith.constant 0 : index
    %c0_59 = arith.constant 0 : index
    %110 = vector.load %arg6[%c3_57, %c0_58, %c0_59] : memref<9x2x2xf32, #tpu.memory_space<vmem>>, vector<1x2x2xf32>
    %111 = vector.shape_cast %110 : vector<1x2x2xf32> to vector<2x2xf32>
    %cst_60 = arith.constant dense<0.000000e+00> : vector<2x128xf32>
    %112 = tpu.matmul %111, %109, %cst_60 {dimension_numbers = #tpu.dot_dimension_numbers<[1], [0], [0], [1], [0, 0, 1, 1], [], []>} : vector<2x2xf32>, vector<2x128xf32>, vector<2x128xf32> -> vector<2x128xf32>
    %113 = arith.addf %102, %112 : vector<2x128xf32>
    %c4 = arith.constant 4 : index
    %c0_61 = arith.constant 0 : index
    %c0_62 = arith.constant 0 : index
    %114 = vector.load %arg6[%c4, %c0_61, %c0_62] : memref<9x2x2xf32, #tpu.memory_space<vmem>>, vector<1x2x2xf32>
    %115 = vector.shape_cast %114 : vector<1x2x2xf32> to vector<2x2xf32>
    %cst_63 = arith.constant dense<0.000000e+00> : vector<2x128xf32>
    %116 = tpu.matmul %115, %64, %cst_63 {dimension_numbers = #tpu.dot_dimension_numbers<[1], [0], [0], [1], [0, 0, 1, 1], [], []>} : vector<2x2xf32>, vector<2x128xf32>, vector<2x128xf32> -> vector<2x128xf32>
    %117 = arith.addf %113, %116 : vector<2x128xf32>
    %c127_i32 = arith.constant 127 : i32
    %118 = tpu.dynamic_rotate %64 by %c127_i32 dim 1 : vector<2x128xf32>, i32 -> vector<2x128xf32>
    %c7_i32_64 = arith.constant 7 : i32
    %119 = vector.broadcast %c7_i32_64 : i32 to vector<1x128xi32>
    %120 = arith.cmpi slt, %5, %119 : vector<1x128xi32>
    %cst_65 = arith.constant 0.000000e+00 : f32
    %121 = vector.shape_cast %120 : vector<1x128xi1> to vector<1x128xi1>
    %122 = vector.broadcast %121 : vector<1x128xi1> to vector<2x128xi1>
    %123 = vector.broadcast %cst_65 : f32 to vector<2x128xf32>
    %124 = arith.select %122, %118, %123 : vector<2x128xi1>, vector<2x128xf32>
    %c5 = arith.constant 5 : index
    %c0_66 = arith.constant 0 : index
    %c0_67 = arith.constant 0 : index
    %125 = vector.load %arg6[%c5, %c0_66, %c0_67] : memref<9x2x2xf32, #tpu.memory_space<vmem>>, vector<1x2x2xf32>
    %126 = vector.shape_cast %125 : vector<1x2x2xf32> to vector<2x2xf32>
    %cst_68 = arith.constant dense<0.000000e+00> : vector<2x128xf32>
    %127 = tpu.matmul %126, %124, %cst_68 {dimension_numbers = #tpu.dot_dimension_numbers<[1], [0], [0], [1], [0, 0, 1, 1], [], []>} : vector<2x2xf32>, vector<2x128xf32>, vector<2x128xf32> -> vector<2x128xf32>
    %128 = arith.addf %117, %127 : vector<2x128xf32>
    %c121_i32 = arith.constant 121 : i32
    %129 = tpu.dynamic_rotate %64 by %c121_i32 dim 1 : vector<2x128xf32>, i32 -> vector<2x128xf32>
    %c7_i32_69 = arith.constant 7 : i32
    %130 = vector.broadcast %c7_i32_69 : i32 to vector<1x128xi32>
    %131 = arith.cmpi slt, %4, %130 : vector<1x128xi32>
    %c1_i32_70 = arith.constant 1 : i32
    %132 = vector.broadcast %c1_i32_70 : i32 to vector<1x128xi32>
    %133 = arith.cmpi sge, %5, %132 : vector<1x128xi32>
    %134 = arith.andi %131, %133 : vector<1x128xi1>
    %cst_71 = arith.constant 0.000000e+00 : f32
    %135 = vector.shape_cast %134 : vector<1x128xi1> to vector<1x128xi1>
    %136 = vector.broadcast %135 : vector<1x128xi1> to vector<2x128xi1>
    %137 = vector.broadcast %cst_71 : f32 to vector<2x128xf32>
    %138 = arith.select %136, %129, %137 : vector<2x128xi1>, vector<2x128xf32>
    %c6 = arith.constant 6 : index
    %c0_72 = arith.constant 0 : index
    %c0_73 = arith.constant 0 : index
    %139 = vector.load %arg6[%c6, %c0_72, %c0_73] : memref<9x2x2xf32, #tpu.memory_space<vmem>>, vector<1x2x2xf32>
    %140 = vector.shape_cast %139 : vector<1x2x2xf32> to vector<2x2xf32>
    %cst_74 = arith.constant dense<0.000000e+00> : vector<2x128xf32>
    %141 = tpu.matmul %140, %138, %cst_74 {dimension_numbers = #tpu.dot_dimension_numbers<[1], [0], [0], [1], [0, 0, 1, 1], [], []>} : vector<2x2xf32>, vector<2x128xf32>, vector<2x128xf32> -> vector<2x128xf32>
    %142 = arith.addf %128, %141 : vector<2x128xf32>
    %c120_i32 = arith.constant 120 : i32
    %143 = tpu.dynamic_rotate %64 by %c120_i32 dim 1 : vector<2x128xf32>, i32 -> vector<2x128xf32>
    %c7_i32_75 = arith.constant 7 : i32
    %144 = vector.broadcast %c7_i32_75 : i32 to vector<1x128xi32>
    %145 = arith.cmpi slt, %4, %144 : vector<1x128xi32>
    %cst_76 = arith.constant 0.000000e+00 : f32
    %146 = vector.shape_cast %145 : vector<1x128xi1> to vector<1x128xi1>
    %147 = vector.broadcast %146 : vector<1x128xi1> to vector<2x128xi1>
    %148 = vector.broadcast %cst_76 : f32 to vector<2x128xf32>
    %149 = arith.select %147, %143, %148 : vector<2x128xi1>, vector<2x128xf32>
    %c7 = arith.constant 7 : index
    %c0_77 = arith.constant 0 : index
    %c0_78 = arith.constant 0 : index
    %150 = vector.load %arg6[%c7, %c0_77, %c0_78] : memref<9x2x2xf32, #tpu.memory_space<vmem>>, vector<1x2x2xf32>
    %151 = vector.shape_cast %150 : vector<1x2x2xf32> to vector<2x2xf32>
    %cst_79 = arith.constant dense<0.000000e+00> : vector<2x128xf32>
    %152 = tpu.matmul %151, %149, %cst_79 {dimension_numbers = #tpu.dot_dimension_numbers<[1], [0], [0], [1], [0, 0, 1, 1], [], []>} : vector<2x2xf32>, vector<2x128xf32>, vector<2x128xf32> -> vector<2x128xf32>
    %153 = arith.addf %142, %152 : vector<2x128xf32>
    %c119_i32 = arith.constant 119 : i32
    %154 = tpu.dynamic_rotate %64 by %c119_i32 dim 1 : vector<2x128xf32>, i32 -> vector<2x128xf32>
    %c7_i32_80 = arith.constant 7 : i32
    %155 = vector.broadcast %c7_i32_80 : i32 to vector<1x128xi32>
    %156 = arith.cmpi slt, %4, %155 : vector<1x128xi32>
    %c7_i32_81 = arith.constant 7 : i32
    %157 = vector.broadcast %c7_i32_81 : i32 to vector<1x128xi32>
    %158 = arith.cmpi slt, %5, %157 : vector<1x128xi32>
    %159 = arith.andi %156, %158 : vector<1x128xi1>
    %cst_82 = arith.constant 0.000000e+00 : f32
    %160 = vector.shape_cast %159 : vector<1x128xi1> to vector<1x128xi1>
    %161 = vector.broadcast %160 : vector<1x128xi1> to vector<2x128xi1>
    %162 = vector.broadcast %cst_82 : f32 to vector<2x128xf32>
    %163 = arith.select %161, %154, %162 : vector<2x128xi1>, vector<2x128xf32>
    %c8 = arith.constant 8 : index
    %c0_83 = arith.constant 0 : index
    %c0_84 = arith.constant 0 : index
    %164 = vector.load %arg6[%c8, %c0_83, %c0_84] : memref<9x2x2xf32, #tpu.memory_space<vmem>>, vector<1x2x2xf32>
    %165 = vector.shape_cast %164 : vector<1x2x2xf32> to vector<2x2xf32>
    %cst_85 = arith.constant dense<0.000000e+00> : vector<2x128xf32>
    %166 = tpu.matmul %165, %163, %cst_85 {dimension_numbers = #tpu.dot_dimension_numbers<[1], [0], [0], [1], [0, 0, 1, 1], [], []>} : vector<2x2xf32>, vector<2x128xf32>, vector<2x128xf32> -> vector<2x128xf32>
    %167 = arith.addf %153, %166 : vector<2x128xf32>
    %c0_86 = arith.constant 0 : index
    %c0_87 = arith.constant 0 : index
    %168 = vector.load %arg7[%c0_86, %c0_87] : memref<2x1xf32, #tpu.memory_space<vmem>>, vector<2x1xf32>
    %169 = vector.broadcast %168 : vector<2x1xf32> to vector<2x128xf32>
    %170 = arith.addf %167, %169 : vector<2x128xf32>
    %cst_88 = arith.constant 0.000000e+00 : f32
    %171 = vector.broadcast %cst_88 : f32 to vector<2x128xf32>
    %172 = arith.cmpf oge, %170, %171 : vector<2x128xf32>
    %173 = vector.broadcast %1 : f32 to vector<2x128xf32>
    %174 = arith.mulf %173, %170 : vector<2x128xf32>
    %175 = arith.select %172, %170, %174 : vector<2x128xi1>, vector<2x128xf32>
    %c0_89 = arith.constant 0 : index
    %c0_90 = arith.constant 0 : index
    %176 = vector.load %arg8[%c0_89, %c0_90] : memref<8x2xf32, #tpu.memory_space<vmem>>, vector<8x2xf32>
    %cst_91 = arith.constant dense<0.000000e+00> : vector<8x128xf32>
    %177 = tpu.matmul %176, %175, %cst_91 {dimension_numbers = #tpu.dot_dimension_numbers<[1], [0], [0], [1], [0, 0, 1, 1], [], []>} : vector<8x2xf32>, vector<2x128xf32>, vector<8x128xf32> -> vector<8x128xf32>
    %c0_92 = arith.constant 0 : index
    %c0_93 = arith.constant 0 : index
    %178 = vector.load %arg9[%c0_92, %c0_93] : memref<8x1xf32, #tpu.memory_space<vmem>>, vector<8x1xf32>
    %179 = vector.broadcast %178 : vector<8x1xf32> to vector<8x128xf32>
    %180 = arith.addf %177, %179 : vector<8x128xf32>
    %cst_94 = arith.constant 0.000000e+00 : f32
    %181 = vector.broadcast %cst_94 : f32 to vector<8x128xf32>
    %182 = arith.cmpf oge, %180, %181 : vector<8x128xf32>
    %183 = vector.broadcast %2 : f32 to vector<8x128xf32>
    %184 = arith.mulf %183, %180 : vector<8x128xf32>
    %185 = arith.select %182, %180, %184 : vector<8x128xi1>, vector<8x128xf32>
    %c0_95 = arith.constant 0 : index
    %c0_96 = arith.constant 0 : index
    %186 = vector.load %arg10[%c0_95, %c0_96] : memref<8x4xf32, #tpu.memory_space<vmem>>, vector<8x4xf32>
    %cst_97 = arith.constant dense<0.000000e+00> : vector<8x128xf32>
    %187 = tpu.matmul %186, %36, %cst_97 {dimension_numbers = #tpu.dot_dimension_numbers<[1], [0], [0], [1], [0, 0, 1, 1], [], []>} : vector<8x4xf32>, vector<4x128xf32>, vector<8x128xf32> -> vector<8x128xf32>
    %188 = arith.addf %187, %185 : vector<8x128xf32>
    %cst_98 = arith.constant 0.000000e+00 : f32
    %189 = vector.broadcast %cst_98 : f32 to vector<8x128xf32>
    %190 = arith.cmpf oge, %188, %189 : vector<8x128xf32>
    %191 = vector.broadcast %3 : f32 to vector<8x128xf32>
    %192 = arith.mulf %191, %188 : vector<8x128xf32>
    %193 = arith.select %190, %188, %192 : vector<8x128xi1>, vector<8x128xf32>
    %c0_99 = arith.constant 0 : index
    %c0_100 = arith.constant 0 : index
    %194 = vector.load %arg11[%c0_99, %c0_100] : memref<8x128xf32, #tpu.memory_space<vmem>>, vector<8x128xf32>
    tpu.vector_store %arg11[%c0_99, %c0_100], %193 {strides = array<i32>} : memref<8x128xf32, #tpu.memory_space<vmem>>, vector<8x128xf32>,
    %c0_101 = arith.constant 0 : index
    %c0_102 = arith.constant 0 : index
    %195 = vector.load %arg12[%c0_101, %c0_102] : memref<4x128xi32, #tpu.memory_space<vmem>>, vector<4x128xi32>
    tpu.vector_store %arg12[%c0_101, %c0_102], %41 {strides = array<i32>} : memref<4x128xi32, #tpu.memory_space<vmem>>, vector<4x128xi32>,
    return
  }
}

</mosaic_0001>

<llo_original>
// kernel: tpu_custom_call.1
$region0: #{tpu_custom_call.1}
  #allocation0 [shape = 'u32[]', space=smem, size = 0x4, offset = 0x4, fixed_abs, tag = 'smem constant byte address 0x4 - core index']
  #allocation1 [shape = 'u32[144,128]{1,0:T(1,128)}', space=vmem, size = 0x12000, scoped, tag = 'internal scratch']
  %s0 = inlined_call_operand.vmem [shape: f32[4], index: 0, kind: input, shape index: {}]
  %s1 = inlined_call_operand.vmem [shape: s32[1,128], index: 1, kind: input, shape index: {}]
  %s2 = inlined_call_operand.vmem [shape: s32[1,128], index: 2, kind: input, shape index: {}]
  %s3 = inlined_call_operand.vmem [shape: f32[4,4,128], index: 3, kind: input, shape index: {}]
  %s4 = inlined_call_operand.vmem [shape: f32[4,2,4], index: 4, kind: input, shape index: {}]
  %s5 = inlined_call_operand.vmem [shape: f32[2,1], index: 5, kind: input, shape index: {}]
  %s6 = inlined_call_operand.vmem [shape: f32[9,2,2], index: 6, kind: input, shape index: {}]
  %s7 = inlined_call_operand.vmem [shape: f32[2,1], index: 7, kind: input, shape index: {}]
  %s8 = inlined_call_operand.vmem [shape: f32[8,2], index: 8, kind: input, shape index: {}]
  %s9 = inlined_call_operand.vmem [shape: f32[8,1], index: 9, kind: input, shape index: {}]
  %s10 = inlined_call_operand.vmem [shape: f32[8,4], index: 10, kind: input, shape index: {}]
  %s11 = inlined_call_operand.hbm [shape: f32[8,128], index: 11, kind: output, shape index: {0}]
  %s12 = inlined_call_operand.hbm [shape: s32[4,128], index: 12, kind: output, shape index: {1}]
  %13 = xla_tuple %s11, %s12
  %s14 = sld [smem:[#allocation0]]
  $region66: #{tpu_custom_call.1} parent=0
    _
  %s16 = ssub.s32 1, %s14
  %s17 = scalar_select 0, %s16, %s14
  $region1: #{tpu_custom_call.1} parent=0
    #allocation2 [shape = 'u8[512]{0}', space=smem, size = 0x200, scoped, tag = 'input window, operand 0, single buffered']
    #allocation3 [shape = 's32[1]{0}', space=sflag, size = 0x4, scoped, tag = 'scoped memory for tpu_custom_call.1']
    #allocation4 [shape = 's32[1]{0}', space=sflag, size = 0x4, scoped, tag = 'scoped memory for tpu_custom_call.1']
    #allocation5 [shape = 'u8[4096]{0}', space=vmem, size = 0x1000, scoped, tag = 'output window, operand 0, single buffered']
    #allocation6 [shape = 'u8[2048]{0}', space=vmem, size = 0x800, scoped, tag = 'output window, operand 1, single buffered']
    #allocation7 [shape = 's32[1]{0}', space=sflag, size = 0x4, scoped, tag = 'scoped memory for tpu_custom_call.1']
    %18 = vsyncpa [#allocation4], 0
    %19 = vsyncpa [#allocation3], 0
    %20 = vsyncpa [#allocation7], 0
    // Predicated region
    $region2: #{tpu_custom_call.1} parent=1 // pred_check
      _
    $region3: #{tpu_custom_call.1} parent=1 // pred_check_branch
      %22 = sbr.rel (0) target = $region5
    $region4: #{tpu_custom_call.1} parent=1 // pred_region
      %s24 = ssub.s32 16, 16
      %25 = vsyncadd [#allocation4], %s24
      %s27 = sshll.u32 %s0, 4
      %s28 = int_to_ptr.vmem [resolvable:$true] %s27
      %30 = dma.vmem_to_smem %s28, 16, [#allocation2], [#allocation4]
    $region5: #{tpu_custom_call.1} parent=1 // pred_fallthru
      _
    // Predicated region
    $region6: #{tpu_custom_call.1} parent=1 // pred_check
      _
    $region7: #{tpu_custom_call.1} parent=1 // pred_check_branch
      %32 = sbr.rel (0) target = $region9
    $region8: #{tpu_custom_call.1} parent=1 // pred_region
      _
    $region9: #{tpu_custom_call.1} parent=1 // pred_fallthru
      _
    // Predicated region
    $region10: #{tpu_custom_call.1} parent=1 // pred_check
      _
    $region11: #{tpu_custom_call.1} parent=1 // pred_check_branch
      %34 = sbr.rel (0) target = $region13
    $region12: #{tpu_custom_call.1} parent=1 // pred_region
      _
    $region13: #{tpu_custom_call.1} parent=1 // pred_fallthru
      _
    // Predicated region
    $region14: #{tpu_custom_call.1} parent=1 // pred_check
      _
    $region15: #{tpu_custom_call.1} parent=1 // pred_check_branch
      %36 = sbr.rel (0) target = $region17
    $region16: #{tpu_custom_call.1} parent=1 // pred_region
      _
    $region17: #{tpu_custom_call.1} parent=1 // pred_fallthru
      _
    // Predicated region
    $region18: #{tpu_custom_call.1} parent=1 // pred_check
      _
    $region19: #{tpu_custom_call.1} parent=1 // pred_check_branch
      %38 = sbr.rel (0) target = $region21
    $region20: #{tpu_custom_call.1} parent=1 // pred_region
      _
    $region21: #{tpu_custom_call.1} parent=1 // pred_fallthru
      _
    // Predicated region
    $region22: #{tpu_custom_call.1} parent=1 // pred_check
      _
    $region23: #{tpu_custom_call.1} parent=1 // pred_check_branch
      %40 = sbr.rel (0) target = $region25
    $region24: #{tpu_custom_call.1} parent=1 // pred_region
      _
    $region25: #{tpu_custom_call.1} parent=1 // pred_fallthru
      _
    // Predicated region
    $region26: #{tpu_custom_call.1} parent=1 // pred_check
      _
    $region27: #{tpu_custom_call.1} parent=1 // pred_check_branch
      %42 = sbr.rel (0) target = $region29
    $region28: #{tpu_custom_call.1} parent=1 // pred_region
      _
    $region29: #{tpu_custom_call.1} parent=1 // pred_fallthru
      _
    // Predicated region
    $region30: #{tpu_custom_call.1} parent=1 // pred_check
      _
    $region31: #{tpu_custom_call.1} parent=1 // pred_check_branch
      %44 = sbr.rel (0) target = $region33
    $region32: #{tpu_custom_call.1} parent=1 // pred_region
      _
    $region33: #{tpu_custom_call.1} parent=1 // pred_fallthru
      _
    // Predicated region
    $region34: #{tpu_custom_call.1} parent=1 // pred_check
      _
    $region35: #{tpu_custom_call.1} parent=1 // pred_check_branch
      %46 = sbr.rel (0) target = $region37
    $region36: #{tpu_custom_call.1} parent=1 // pred_region
      _
    $region37: #{tpu_custom_call.1} parent=1 // pred_fallthru
      _
    // Predicated region
    $region38: #{tpu_custom_call.1} parent=1 // pred_check
      _
    $region39: #{tpu_custom_call.1} parent=1 // pred_check_branch
      %48 = sbr.rel (0) target = $region41
    $region40: #{tpu_custom_call.1} parent=1 // pred_region
      _
    $region41: #{tpu_custom_call.1} parent=1 // pred_fallthru
      _
    // Predicated region
    $region42: #{tpu_custom_call.1} parent=1 // pred_check
      _
    $region43: #{tpu_custom_call.1} parent=1 // pred_check_branch
      %50 = sbr.rel (0) target = $region45
    $region44: #{tpu_custom_call.1} parent=1 // pred_region
      _
    $region45: #{tpu_custom_call.1} parent=1 // pred_fallthru
      _
    // Predicated region
    $region46: #{tpu_custom_call.1} parent=1 // pred_check
      _
    $region47: #{tpu_custom_call.1} parent=1 // pred_check_branch
      %52 = sbr.rel (0) target = $region49
    $region48: #{tpu_custom_call.1} parent=1 // pred_region
      %53 = dma.done [#allocation4], 16
    $region49: #{tpu_custom_call.1} parent=1 // pred_fallthru
      _
    %54 = sfence
    %s55 = sld [smem:[#allocation2]]
    %s56 = sld [smem:[#allocation2 + $0x1]]
    %s57 = sld [smem:[#allocation2 + $0x2]]
    %s58 = sld [smem:[#allocation2 + $0x3]]
    %v59 = vld [vmem:[%s1] sm:$0x1]
    %v60 = vld [vmem:[%s2] sm:$0x1]
    %v61 = vld [vmem:[%s3] sm:$0xf]
    %s62 = scalar_lea.vmem %s3, 4
    %v63 = vld [vmem:[%s62] sm:$0xf]
    %s64 = scalar_lea.vmem %s3, 8
    %v65 = vld [vmem:[%s64] sm:$0xf]
    %s66 = scalar_lea.vmem %s3, 12
    %v67 = vld [vmem:[%s66] sm:$0xf]
    %v68 = vmul.u32 %v59, 32
    %v69 = vmul.u32 %v60, 2
    %v70 = vadd.s32 %v68, %v69
    %v71 = vlaneseq
    %v72 = vshrl.u32 %v71, 7
    %v73 = vsub.s32 0, %v72
    %v74 = vrot.slane %v70, %v73
    %vm75 = vcmp.gt.f32.partialorder %v63, %v61
    %v76 = vsel %vm75, %v63, %v61
    %v77 = vadd.s32 %v70, 1
    %v78 = vlaneseq
    %v79 = vshrl.u32 %v78, 7
    %v80 = vsub.s32 0, %v79
    %v81 = vrot.slane %v77, %v80
    %v82 = vsel %vm75, %v81, %v74
    %vm83 = vcmp.gt.f32.partialorder %v65, %v76
    %v84 = vsel %vm83, %v65, %v76
    %v85 = vadd.s32 %v70, 16
    %v86 = vlaneseq
    %v87 = vshrl.u32 %v86, 7
    %v88 = vsub.s32 0, %v87
    %v89 = vrot.slane %v85, %v88
    %v90 = vsel %vm83, %v89, %v82
    %vm91 = vcmp.gt.f32.partialorder %v67, %v84
    %v92 = vsel %vm91, %v67, %v84
    %v93 = vadd.s32 %v70, 17
    %v94 = vlaneseq
    %v95 = vshrl.u32 %v94, 7
    %v96 = vsub.s32 0, %v95
    %v97 = vrot.slane %v93, %v96
    %v98 = vsel %vm91, %v97, %v90
    %v99 = vld [vmem:[%s4] sm:$0x3]
    %s100 = scalar_lea.vmem %s4, 2
    %v101 = vld [vmem:[%s100] sm:$0x3]
    %vm102 = vcmask 31744
    %v104 = vsel %vm102, %v101, 0
    %vm106 = vcmask 1043456
    %v108 = vsel %vm106, %v63, 0
    %110 = vmatprep.subr.mxu0 0.0
    %111 = vmatpush1.msra.mxu0 0.0
    %112 = vmatprep.subr.mxu0 0.0
    %113 = vmatpush1.msra.mxu0 0.0
    %114 = vmatprep.subr.mxu0 0.0
    %115 = vmatpush1.msra.mxu0 0.0
    %116 = vmatprep.subr.mxu0 0.0
    %117 = vmatpush1.msra.mxu0 0.0
    %118 = vmatprep.subr.mxu0 0.0
    %119 = vmatpush1.msra.mxu0 0.0
    %120 = vmatprep.subr.mxu0 0.0
    %121 = vmatpush1.msra.mxu0 0.0
    %122 = vmatprep.subr.mxu0 0.0
    %123 = vmatpush1.msra.mxu0 0.0
    %124 = vmatprep.subr.mxu0 0.0
    %125 = vmatpush1.msra.mxu0 0.0
    %126 = vmatprep.subr.mxu0 0.0
    %127 = vmatpush1.msra.mxu0 0.0
    %128 = vmatprep.subr.mxu0 0.0
    %129 = vmatpush1.msra.mxu0 0.0
    %130 = vmatprep.subr.mxu0 0.0
    %131 = vmatpush1.msra.mxu0 0.0
    %132 = vmatprep.subr.mxu0 0.0
    %133 = vmatpush1.msra.mxu0 0.0
    %134 = vmatprep.subr.mxu0 0.0
    %135 = vmatpush1.msra.mxu0 0.0
    %136 = vmatprep.subr.mxu0 0.0
    %137 = vmatpush1.msra.mxu0 0.0
    %138 = vmatprep.subr.mxu0 0.0
    %139 = vmatpush1.msra.mxu0 0.0
    %140 = vmatprep.subr.mxu0 0.0
    %141 = vmatpush1.msra.mxu0 %v108
    %142 = vmatprep.subr.mxu0 0.0
    %143 = vmatpush2.msra.mxu0 0.0
    %144 = vmatprep.subr.mxu0 0.0
    %145 = vmatpush2.msra.mxu0 0.0
    %146 = vmatprep.subr.mxu0 0.0
    %147 = vmatpush2.msra.mxu0 0.0
    %148 = vmatprep.subr.mxu0 0.0
    %149 = vmatpush2.msra.mxu0 0.0
    %150 = vmatprep.subr.mxu0 0.0
    %151 = vmatpush2.msra.mxu0 0.0
    %152 = vmatprep.subr.mxu0 0.0
    %153 = vmatpush2.msra.mxu0 0.0
    %154 = vmatprep.subr.mxu0 0.0
    %155 = vmatpush2.msra.mxu0 0.0
    %156 = vmatprep.subr.mxu0 0.0
    %157 = vmatpush2.msra.mxu0 0.0
    %158 = vmatprep.subr.mxu0 0.0
    %159 = vmatpush2.msra.mxu0 0.0
    %160 = vmatprep.subr.mxu0 0.0
    %161 = vmatpush2.msra.mxu0 0.0
    %162 = vmatprep.subr.mxu0 0.0
    %163 = vmatpush2.msra.mxu0 0.0
    %164 = vmatprep.subr.mxu0 0.0
    %165 = vmatpush2.msra.mxu0 0.0
    %166 = vmatprep.subr.mxu0 0.0
    %167 = vmatpush2.msra.mxu0 0.0
    %168 = vmatprep.subr.mxu0 0.0
    %169 = vmatpush2.msra.mxu0 0.0
    %170 = vmatprep.subr.mxu0 0.0
    %171 = vmatpush2.msra.mxu0 0.0
    %172 = vmatprep.subr.mxu0 0.0
    %173 = vmatpush2.msra.mxu0 0.0
    %174 = vmatprep.mubr.f32.mxu0 0.0
    %175 = vmatmul.mubr.f32.gmra.mxu0 %v104
    %v176 = vpop.f32.mrf.mxu0
    %v177 = vadd.f32 0.0, %v176
    %v178 = vpop.f32.mrf.mxu0
    %179 = vdwg.mxu0
    %v181 = vsel %vm102, %v99, 0
    %v184 = vsel %vm106, %v61, 0
    %186 = vmatprep.subr.mxu0 0.0
    %187 = vmatpush1.msra.mxu0 0.0
    %188 = vmatprep.subr.mxu0 0.0
    %189 = vmatpush1.msra.mxu0 0.0
    %190 = vmatprep.subr.mxu0 0.0
    %191 = vmatpush1.msra.mxu0 0.0
    %192 = vmatprep.subr.mxu0 0.0
    %193 = vmatpush1.msra.mxu0 0.0
    %194 = vmatprep.subr.mxu0 0.0
    %195 = vmatpush1.msra.mxu0 0.0
    %196 = vmatprep.subr.mxu0 0.0
    %197 = vmatpush1.msra.mxu0 0.0
    %198 = vmatprep.subr.mxu0 0.0
    %199 = vmatpush1.msra.mxu0 0.0
    %200 = vmatprep.subr.mxu0 0.0
    %201 = vmatpush1.msra.mxu0 0.0
    %202 = vmatprep.subr.mxu0 0.0
    %203 = vmatpush1.msra.mxu0 0.0
    %204 = vmatprep.subr.mxu0 0.0
    %205 = vmatpush1.msra.mxu0 0.0
    %206 = vmatprep.subr.mxu0 0.0
    %207 = vmatpush1.msra.mxu0 0.0
    %208 = vmatprep.subr.mxu0 0.0
    %209 = vmatpush1.msra.mxu0 0.0
    %210 = vmatprep.subr.mxu0 0.0
    %211 = vmatpush1.msra.mxu0 0.0
    %212 = vmatprep.subr.mxu0 0.0
    %213 = vmatpush1.msra.mxu0 0.0
    %214 = vmatprep.subr.mxu0 0.0
    %215 = vmatpush1.msra.mxu0 0.0
    %216 = vmatprep.subr.mxu0 0.0
    %217 = vmatpush1.msra.mxu0 %v184
    %218 = vmatprep.subr.mxu0 0.0
    %219 = vmatpush2.msra.mxu0 0.0
    %220 = vmatprep.subr.mxu0 0.0
    %221 = vmatpush2.msra.mxu0 0.0
    %222 = vmatprep.subr.mxu0 0.0
    %223 = vmatpush2.msra.mxu0 0.0
    %224 = vmatprep.subr.mxu0 0.0
    %225 = vmatpush2.msra.mxu0 0.0
    %226 = vmatprep.subr.mxu0 0.0
    %227 = vmatpush2.msra.mxu0 0.0
    %228 = vmatprep.subr.mxu0 0.0
    %229 = vmatpush2.msra.mxu0 0.0
    %230 = vmatprep.subr.mxu0 0.0
    %231 = vmatpush2.msra.mxu0 0.0
    %232 = vmatprep.subr.mxu0 0.0
    %233 = vmatpush2.msra.mxu0 0.0
    %234 = vmatprep.subr.mxu0 0.0
    %235 = vmatpush2.msra.mxu0 0.0
    %236 = vmatprep.subr.mxu0 0.0
    %237 = vmatpush2.msra.mxu0 0.0
    %238 = vmatprep.subr.mxu0 0.0
    %239 = vmatpush2.msra.mxu0 0.0
    %240 = vmatprep.subr.mxu0 0.0
    %241 = vmatpush2.msra.mxu0 0.0
    %242 = vmatprep.subr.mxu0 0.0
    %243 = vmatpush2.msra.mxu0 0.0
    %244 = vmatprep.subr.mxu0 0.0
    %245 = vmatpush2.msra.mxu0 0.0
    %246 = vmatprep.subr.mxu0 0.0
    %247 = vmatpush2.msra.mxu0 0.0
    %248 = vmatprep.subr.mxu0 0.0
    %249 = vmatpush2.msra.mxu0 0.0
    %250 = vmatprep.mubr.f32.mxu0 0.0
    %251 = vmatmul.mubr.f32.gmra.mxu0 %v181
    %v252 = vpop.f32.mrf.mxu0
    %v253 = vadd.f32 %v177, %v252
    %v254 = vpop.f32.mrf.mxu0
    %255 = vdwg.mxu0
    %s256 = scalar_lea.vmem %s4, 4
    %v257 = vld [vmem:[%s256] sm:$0x3]
    %v259 = vsel %vm102, %v257, 0
    %v262 = vsel %vm106, %v65, 0
    %264 = vmatprep.subr.mxu0 0.0
    %265 = vmatpush1.msra.mxu0 0.0
    %266 = vmatprep.subr.mxu0 0.0
    %267 = vmatpush1.msra.mxu0 0.0
    %268 = vmatprep.subr.mxu0 0.0
    %269 = vmatpush1.msra.mxu0 0.0
    %270 = vmatprep.subr.mxu0 0.0
    %271 = vmatpush1.msra.mxu0 0.0
    %272 = vmatprep.subr.mxu0 0.0
    %273 = vmatpush1.msra.mxu0 0.0
    %274 = vmatprep.subr.mxu0 0.0
    %275 = vmatpush1.msra.mxu0 0.0
    %276 = vmatprep.subr.mxu0 0.0
    %277 = vmatpush1.msra.mxu0 0.0
    %278 = vmatprep.subr.mxu0 0.0
    %279 = vmatpush1.msra.mxu0 0.0
    %280 = vmatprep.subr.mxu0 0.0
    %281 = vmatpush1.msra.mxu0 0.0
    %282 = vmatprep.subr.mxu0 0.0
    %283 = vmatpush1.msra.mxu0 0.0
    %284 = vmatprep.subr.mxu0 0.0
    %285 = vmatpush1.msra.mxu0 0.0
    %286 = vmatprep.subr.mxu0 0.0
    %287 = vmatpush1.msra.mxu0 0.0
    %288 = vmatprep.subr.mxu0 0.0
    %289 = vmatpush1.msra.mxu0 0.0
    %290 = vmatprep.subr.mxu0 0.0
    %291 = vmatpush1.msra.mxu0 0.0
    %292 = vmatprep.subr.mxu0 0.0
    %293 = vmatpush1.msra.mxu0 0.0
    %294 = vmatprep.subr.mxu0 0.0
    %295 = vmatpush1.msra.mxu0 %v262
    %296 = vmatprep.subr.mxu0 0.0
    %297 = vmatpush2.msra.mxu0 0.0
    %298 = vmatprep.subr.mxu0 0.0
    %299 = vmatpush2.msra.mxu0 0.0
    %300 = vmatprep.subr.mxu0 0.0
    %301 = vmatpush2.msra.mxu0 0.0
    %302 = vmatprep.subr.mxu0 0.0
    %303 = vmatpush2.msra.mxu0 0.0
    %304 = vmatprep.subr.mxu0 0.0
    %305 = vmatpush2.msra.mxu0 0.0
    %306 = vmatprep.subr.mxu0 0.0
    %307 = vmatpush2.msra.mxu0 0.0
    %308 = vmatprep.subr.mxu0 0.0
    %309 = vmatpush2.msra.mxu0 0.0
    %310 = vmatprep.subr.mxu0 0.0
    %311 = vmatpush2.msra.mxu0 0.0
    %312 = vmatprep.subr.mxu0 0.0
    %313 = vmatpush2.msra.mxu0 0.0
    %314 = vmatprep.subr.mxu0 0.0
    %315 = vmatpush2.msra.mxu0 0.0
    %316 = vmatprep.subr.mxu0 0.0
    %317 = vmatpush2.msra.mxu0 0.0
    %318 = vmatprep.subr.mxu0 0.0
    %319 = vmatpush2.msra.mxu0 0.0
    %320 = vmatprep.subr.mxu0 0.0
    %321 = vmatpush2.msra.mxu0 0.0
    %322 = vmatprep.subr.mxu0 0.0
    %323 = vmatpush2.msra.mxu0 0.0
    %324 = vmatprep.subr.mxu0 0.0
    %325 = vmatpush2.msra.mxu0 0.0
    %326 = vmatprep.subr.mxu0 0.0
    %327 = vmatpush2.msra.mxu0 0.0
    %328 = vmatprep.mubr.f32.mxu0 0.0
    %329 = vmatmul.mubr.f32.gmra.mxu0 %v259
    %v330 = vpop.f32.mrf.mxu0
    %v331 = vadd.f32 0.0, %v330
    %v332 = vpop.f32.mrf.mxu0
    %333 = vdwg.mxu0
    %v334 = vadd.f32 %v253, %v331
    %s335 = scalar_lea.vmem %s4, 6
    %v336 = vld [vmem:[%s335] sm:$0x3]
    %v338 = vsel %vm102, %v336, 0
    %v341 = vsel %vm106, %v67, 0
    %343 = vmatprep.subr.mxu0 0.0
    %344 = vmatpush1.msra.mxu0 0.0
    %345 = vmatprep.subr.mxu0 0.0
    %346 = vmatpush1.msra.mxu0 0.0
    %347 = vmatprep.subr.mxu0 0.0
    %348 = vmatpush1.msra.mxu0 0.0
    %349 = vmatprep.subr.mxu0 0.0
    %350 = vmatpush1.msra.mxu0 0.0
    %351 = vmatprep.subr.mxu0 0.0
    %352 = vmatpush1.msra.mxu0 0.0
    %353 = vmatprep.subr.mxu0 0.0
    %354 = vmatpush1.msra.mxu0 0.0
    %355 = vmatprep.subr.mxu0 0.0
    %356 = vmatpush1.msra.mxu0 0.0
    %357 = vmatprep.subr.mxu0 0.0
    %358 = vmatpush1.msra.mxu0 0.0
    %359 = vmatprep.subr.mxu0 0.0
    %360 = vmatpush1.msra.mxu0 0.0
    %361 = vmatprep.subr.mxu0 0.0
    %362 = vmatpush1.msra.mxu0 0.0
    %363 = vmatprep.subr.mxu0 0.0
    %364 = vmatpush1.msra.mxu0 0.0
    %365 = vmatprep.subr.mxu0 0.0
    %366 = vmatpush1.msra.mxu0 0.0
    %367 = vmatprep.subr.mxu0 0.0
    %368 = vmatpush1.msra.mxu0 0.0
    %369 = vmatprep.subr.mxu0 0.0
    %370 = vmatpush1.msra.mxu0 0.0
    %371 = vmatprep.subr.mxu0 0.0
    %372 = vmatpush1.msra.mxu0 0.0
    %373 = vmatprep.subr.mxu0 0.0
    %374 = vmatpush1.msra.mxu0 %v341
    %375 = vmatprep.subr.mxu0 0.0
    %376 = vmatpush2.msra.mxu0 0.0
    %377 = vmatprep.subr.mxu0 0.0
    %378 = vmatpush2.msra.mxu0 0.0
    %379 = vmatprep.subr.mxu0 0.0
    %380 = vmatpush2.msra.mxu0 0.0
    %381 = vmatprep.subr.mxu0 0.0
    %382 = vmatpush2.msra.mxu0 0.0
    %383 = vmatprep.subr.mxu0 0.0
    %384 = vmatpush2.msra.mxu0 0.0
    %385 = vmatprep.subr.mxu0 0.0
    %386 = vmatpush2.msra.mxu0 0.0
    %387 = vmatprep.subr.mxu0 0.0
    %388 = vmatpush2.msra.mxu0 0.0
    %389 = vmatprep.subr.mxu0 0.0
    %390 = vmatpush2.msra.mxu0 0.0
    %391 = vmatprep.subr.mxu0 0.0
    %392 = vmatpush2.msra.mxu0 0.0
    %393 = vmatprep.subr.mxu0 0.0
    %394 = vmatpush2.msra.mxu0 0.0
    %395 = vmatprep.subr.mxu0 0.0
    %396 = vmatpush2.msra.mxu0 0.0
    %397 = vmatprep.subr.mxu0 0.0
    %398 = vmatpush2.msra.mxu0 0.0
    %399 = vmatprep.subr.mxu0 0.0
    %400 = vmatpush2.msra.mxu0 0.0
    %401 = vmatprep.subr.mxu0 0.0
    %402 = vmatpush2.msra.mxu0 0.0
    %403 = vmatprep.subr.mxu0 0.0
    %404 = vmatpush2.msra.mxu0 0.0
    %405 = vmatprep.subr.mxu0 0.0
    %406 = vmatpush2.msra.mxu0 0.0
    %407 = vmatprep.mubr.f32.mxu0 0.0
    %408 = vmatmul.mubr.f32.gmra.mxu0 %v338
    %v409 = vpop.f32.mrf.mxu0
    %v410 = vadd.f32 0.0, %v409
    %v411 = vpop.f32.mrf.mxu0
    %412 = vdwg.mxu0
    %v413 = vadd.f32 %v334, %v410
    %v414 = vld [vmem:[%s5] sm:$0x3]
    %416 = vset.pattern.permute.xlu0 0
    %417 = vperm.xlu0 %416, %v414
    %v418 = vpop.permute.xlu0 %417
    %v420 = vadd.f32 %v413, %v418
    %vm421 = vcmp.ge.f32.partialorder %v420, 0.0
    %v422 = vstv %s55
    %v423 = vmul.f32 %v422, %v420
    %v424 = vsel %vm421, %v420, %v423
    %425 = vrot.lane.b32.xlu0 %v424, 9
    %v426 = vpop.permute.xlu0 %425
    %vm427 = vcmp.ge.s32.totalorder %v59, 1
    %vm428 = vcmp.ge.s32.totalorder %v60, 1
    %vm429 = vmand %vm427, %vm428
    %v430 = vsel %vm429, 1, 0
    %v431 = vlaneseq
    %v432 = vshrl.u32 %v431, 7
    %v433 = vsub.s32 0, %v432
    %v434 = vrot.slane %v430, %v433
    %vm435 = vcmp.eq.s32.totalorder %v434, 1
    %v436 = vsel %vm435, %v426, 0.0
    %v437 = vld [vmem:[%s6] sm:$0x3]
    %438 = vrot.lane.b32.xlu0 %v424, 8
    %v439 = vpop.permute.xlu0 %438
    %v440 = vsel %vm427, 1, 0
    %v441 = vlaneseq
    %v442 = vshrl.u32 %v441, 7
    %v443 = vsub.s32 0, %v442
    %v444 = vrot.slane %v440, %v443
    %vm445 = vcmp.eq.s32.totalorder %v444, 1
    %v446 = vsel %vm445, %v439, 0.0
    %s447 = scalar_lea.vmem %s6, 2
    %v448 = vld [vmem:[%s447] sm:$0x3]
    %vm449 = vcmask 15360
    %v451 = vsel %vm449, %v448, 0
    %vm453 = vcmask 1041408
    %v455 = vsel %vm453, %v446, 0
    %457 = vmatprep.subr.mxu0 0.0
    %458 = vmatpush1.msra.mxu0 0.0
    %459 = vmatprep.subr.mxu0 0.0
    %460 = vmatpush1.msra.mxu0 0.0
    %461 = vmatprep.subr.mxu0 0.0
    %462 = vmatpush1.msra.mxu0 0.0
    %463 = vmatprep.subr.mxu0 0.0
    %464 = vmatpush1.msra.mxu0 0.0
    %465 = vmatprep.subr.mxu0 0.0
    %466 = vmatpush1.msra.mxu0 0.0
    %467 = vmatprep.subr.mxu0 0.0
    %468 = vmatpush1.msra.mxu0 0.0
    %469 = vmatprep.subr.mxu0 0.0
    %470 = vmatpush1.msra.mxu0 0.0
    %471 = vmatprep.subr.mxu0 0.0
    %472 = vmatpush1.msra.mxu0 0.0
    %473 = vmatprep.subr.mxu0 0.0
    %474 = vmatpush1.msra.mxu0 0.0
    %475 = vmatprep.subr.mxu0 0.0
    %476 = vmatpush1.msra.mxu0 0.0
    %477 = vmatprep.subr.mxu0 0.0
    %478 = vmatpush1.msra.mxu0 0.0
    %479 = vmatprep.subr.mxu0 0.0
    %480 = vmatpush1.msra.mxu0 0.0
    %481 = vmatprep.subr.mxu0 0.0
    %482 = vmatpush1.msra.mxu0 0.0
    %483 = vmatprep.subr.mxu0 0.0
    %484 = vmatpush1.msra.mxu0 0.0
    %485 = vmatprep.subr.mxu0 0.0
    %486 = vmatpush1.msra.mxu0 0.0
    %487 = vmatprep.subr.mxu0 0.0
    %488 = vmatpush1.msra.mxu0 %v455
    %489 = vmatprep.subr.mxu0 0.0
    %490 = vmatpush2.msra.mxu0 0.0
    %491 = vmatprep.subr.mxu0 0.0
    %492 = vmatpush2.msra.mxu0 0.0
    %493 = vmatprep.subr.mxu0 0.0
    %494 = vmatpush2.msra.mxu0 0.0
    %495 = vmatprep.subr.mxu0 0.0
    %496 = vmatpush2.msra.mxu0 0.0
    %497 = vmatprep.subr.mxu0 0.0
    %498 = vmatpush2.msra.mxu0 0.0
    %499 = vmatprep.subr.mxu0 0.0
    %500 = vmatpush2.msra.mxu0 0.0
    %501 = vmatprep.subr.mxu0 0.0
    %502 = vmatpush2.msra.mxu0 0.0
    %503 = vmatprep.subr.mxu0 0.0
    %504 = vmatpush2.msra.mxu0 0.0
    %505 = vmatprep.subr.mxu0 0.0
    %506 = vmatpush2.msra.mxu0 0.0
    %507 = vmatprep.subr.mxu0 0.0
    %508 = vmatpush2.msra.mxu0 0.0
    %509 = vmatprep.subr.mxu0 0.0
    %510 = vmatpush2.msra.mxu0 0.0
    %511 = vmatprep.subr.mxu0 0.0
    %512 = vmatpush2.msra.mxu0 0.0
    %513 = vmatprep.subr.mxu0 0.0
    %514 = vmatpush2.msra.mxu0 0.0
    %515 = vmatprep.subr.mxu0 0.0
    %516 = vmatpush2.msra.mxu0 0.0
    %517 = vmatprep.subr.mxu0 0.0
    %518 = vmatpush2.msra.mxu0 0.0
    %519 = vmatprep.subr.mxu0 0.0
    %520 = vmatpush2.msra.mxu0 0.0
    %521 = vmatprep.mubr.f32.mxu0 0.0
    %522 = vmatmul.mubr.f32.gmra.mxu0 %v451
    %v523 = vpop.f32.mrf.mxu0
    %v524 = vadd.f32 0.0, %v523
    %v525 = vpop.f32.mrf.mxu0
    %526 = vdwg.mxu0
    %v528 = vsel %vm449, %v437, 0
    %v531 = vsel %vm453, %v436, 0
    %533 = vmatprep.subr.mxu0 0.0
    %534 = vmatpush1.msra.mxu0 0.0
    %535 = vmatprep.subr.mxu0 0.0
    %536 = vmatpush1.msra.mxu0 0.0
    %537 = vmatprep.subr.mxu0 0.0
    %538 = vmatpush1.msra.mxu0 0.0
    %539 = vmatprep.subr.mxu0 0.0
    %540 = vmatpush1.msra.mxu0 0.0
    %541 = vmatprep.subr.mxu0 0.0
    %542 = vmatpush1.msra.mxu0 0.0
    %543 = vmatprep.subr.mxu0 0.0
    %544 = vmatpush1.msra.mxu0 0.0
    %545 = vmatprep.subr.mxu0 0.0
    %546 = vmatpush1.msra.mxu0 0.0
    %547 = vmatprep.subr.mxu0 0.0
    %548 = vmatpush1.msra.mxu0 0.0
    %549 = vmatprep.subr.mxu0 0.0
    %550 = vmatpush1.msra.mxu0 0.0
    %551 = vmatprep.subr.mxu0 0.0
    %552 = vmatpush1.msra.mxu0 0.0
    %553 = vmatprep.subr.mxu0 0.0
    %554 = vmatpush1.msra.mxu0 0.0
    %555 = vmatprep.subr.mxu0 0.0
    %556 = vmatpush1.msra.mxu0 0.0
    %557 = vmatprep.subr.mxu0 0.0
    %558 = vmatpush1.msra.mxu0 0.0
    %559 = vmatprep.subr.mxu0 0.0
    %560 = vmatpush1.msra.mxu0 0.0
    %561 = vmatprep.subr.mxu0 0.0
    %562 = vmatpush1.msra.mxu0 0.0
    %563 = vmatprep.subr.mxu0 0.0
    %564 = vmatpush1.msra.mxu0 %v531
    %565 = vmatprep.subr.mxu0 0.0
    %566 = vmatpush2.msra.mxu0 0.0
    %567 = vmatprep.subr.mxu0 0.0
    %568 = vmatpush2.msra.mxu0 0.0
    %569 = vmatprep.subr.mxu0 0.0
    %570 = vmatpush2.msra.mxu0 0.0
    %571 = vmatprep.subr.mxu0 0.0
    %572 = vmatpush2.msra.mxu0 0.0
    %573 = vmatprep.subr.mxu0 0.0
    %574 = vmatpush2.msra.mxu0 0.0
    %575 = vmatprep.subr.mxu0 0.0
    %576 = vmatpush2.msra.mxu0 0.0
    %577 = vmatprep.subr.mxu0 0.0
    %578 = vmatpush2.msra.mxu0 0.0
    %579 = vmatprep.subr.mxu0 0.0
    %580 = vmatpush2.msra.mxu0 0.0
    %581 = vmatprep.subr.mxu0 0.0
    %582 = vmatpush2.msra.mxu0 0.0
    %583 = vmatprep.subr.mxu0 0.0
    %584 = vmatpush2.msra.mxu0 0.0
    %585 = vmatprep.subr.mxu0 0.0
    %586 = vmatpush2.msra.mxu0 0.0
    %587 = vmatprep.subr.mxu0 0.0
    %588 = vmatpush2.msra.mxu0 0.0
    %589 = vmatprep.subr.mxu0 0.0
    %590 = vmatpush2.msra.mxu0 0.0
    %591 = vmatprep.subr.mxu0 0.0
    %592 = vmatpush2.msra.mxu0 0.0
    %593 = vmatprep.subr.mxu0 0.0
    %594 = vmatpush2.msra.mxu0 0.0
    %595 = vmatprep.subr.mxu0 0.0
    %596 = vmatpush2.msra.mxu0 0.0
    %597 = vmatprep.mubr.f32.mxu0 0.0
    %598 = vmatmul.mubr.f32.gmra.mxu0 %v528
    %v599 = vpop.f32.mrf.mxu0
    %v600 = vadd.f32 %v524, %v599
    %v601 = vpop.f32.mrf.mxu0
    %602 = vdwg.mxu0
    %603 = vrot.lane.b32.xlu0 %v424, 7
    %v604 = vpop.permute.xlu0 %603
    %vm605 = vcmp.lt.s32.totalorder %v60, 7
    %vm606 = vmand %vm427, %vm605
    %v607 = vsel %vm606, 1, 0
    %v608 = vlaneseq
    %v609 = vshrl.u32 %v608, 7
    %v610 = vsub.s32 0, %v609
    %v611 = vrot.slane %v607, %v610
    %vm612 = vcmp.eq.s32.totalorder %v611, 1
    %v613 = vsel %vm612, %v604, 0.0
    %s614 = scalar_lea.vmem %s6, 4
    %v615 = vld [vmem:[%s614] sm:$0x3]
    %v617 = vsel %vm449, %v615, 0
    %v620 = vsel %vm453, %v613, 0
    %622 = vmatprep.subr.mxu0 0.0
    %623 = vmatpush1.msra.mxu0 0.0
    %624 = vmatprep.subr.mxu0 0.0
    %625 = vmatpush1.msra.mxu0 0.0
    %626 = vmatprep.subr.mxu0 0.0
    %627 = vmatpush1.msra.mxu0 0.0
    %628 = vmatprep.subr.mxu0 0.0
    %629 = vmatpush1.msra.mxu0 0.0
    %630 = vmatprep.subr.mxu0 0.0
    %631 = vmatpush1.msra.mxu0 0.0
    %632 = vmatprep.subr.mxu0 0.0
    %633 = vmatpush1.msra.mxu0 0.0
    %634 = vmatprep.subr.mxu0 0.0
    %635 = vmatpush1.msra.mxu0 0.0
    %636 = vmatprep.subr.mxu0 0.0
    %637 = vmatpush1.msra.mxu0 0.0
    %638 = vmatprep.subr.mxu0 0.0
    %639 = vmatpush1.msra.mxu0 0.0
    %640 = vmatprep.subr.mxu0 0.0
    %641 = vmatpush1.msra.mxu0 0.0
    %642 = vmatprep.subr.mxu0 0.0
    %643 = vmatpush1.msra.mxu0 0.0
    %644 = vmatprep.subr.mxu0 0.0
    %645 = vmatpush1.msra.mxu0 0.0
    %646 = vmatprep.subr.mxu0 0.0
    %647 = vmatpush1.msra.mxu0 0.0
    %648 = vmatprep.subr.mxu0 0.0
    %649 = vmatpush1.msra.mxu0 0.0
    %650 = vmatprep.subr.mxu0 0.0
    %651 = vmatpush1.msra.mxu0 0.0
    %652 = vmatprep.subr.mxu0 0.0
    %653 = vmatpush1.msra.mxu0 %v620
    %654 = vmatprep.subr.mxu0 0.0
    %655 = vmatpush2.msra.mxu0 0.0
    %656 = vmatprep.subr.mxu0 0.0
    %657 = vmatpush2.msra.mxu0 0.0
    %658 = vmatprep.subr.mxu0 0.0
    %659 = vmatpush2.msra.mxu0 0.0
    %660 = vmatprep.subr.mxu0 0.0
    %661 = vmatpush2.msra.mxu0 0.0
    %662 = vmatprep.subr.mxu0 0.0
    %663 = vmatpush2.msra.mxu0 0.0
    %664 = vmatprep.subr.mxu0 0.0
    %665 = vmatpush2.msra.mxu0 0.0
    %666 = vmatprep.subr.mxu0 0.0
    %667 = vmatpush2.msra.mxu0 0.0
    %668 = vmatprep.subr.mxu0 0.0
    %669 = vmatpush2.msra.mxu0 0.0
    %670 = vmatprep.subr.mxu0 0.0
    %671 = vmatpush2.msra.mxu0 0.0
    %672 = vmatprep.subr.mxu0 0.0
    %673 = vmatpush2.msra.mxu0 0.0
    %674 = vmatprep.subr.mxu0 0.0
    %675 = vmatpush2.msra.mxu0 0.0
    %676 = vmatprep.subr.mxu0 0.0
    %677 = vmatpush2.msra.mxu0 0.0
    %678 = vmatprep.subr.mxu0 0.0
    %679 = vmatpush2.msra.mxu0 0.0
    %680 = vmatprep.subr.mxu0 0.0
    %681 = vmatpush2.msra.mxu0 0.0
    %682 = vmatprep.subr.mxu0 0.0
    %683 = vmatpush2.msra.mxu0 0.0
    %684 = vmatprep.subr.mxu0 0.0
    %685 = vmatpush2.msra.mxu0 0.0
    %686 = vmatprep.mubr.f32.mxu0 0.0
    %687 = vmatmul.mubr.f32.gmra.mxu0 %v617
    %v688 = vpop.f32.mrf.mxu0
    %v689 = vadd.f32 0.0, %v688
    %v690 = vpop.f32.mrf.mxu0
    %691 = vdwg.mxu0
    %v692 = vadd.f32 %v600, %v689
    %693 = vrot.lane.b32.xlu0 %v424, 1
    %v694 = vpop.permute.xlu0 %693
    %v695 = vsel %vm428, 1, 0
    %v696 = vlaneseq
    %v697 = vshrl.u32 %v696, 7
    %v698 = vsub.s32 0, %v697
    %v699 = vrot.slane %v695, %v698
    %vm700 = vcmp.eq.s32.totalorder %v699, 1
    %v701 = vsel %vm700, %v694, 0.0
    %s702 = scalar_lea.vmem %s6, 6
    %v703 = vld [vmem:[%s702] sm:$0x3]
    %v705 = vsel %vm449, %v703, 0
    %v708 = vsel %vm453, %v701, 0
    %710 = vmatprep.subr.mxu0 0.0
    %711 = vmatpush1.msra.mxu0 0.0
    %712 = vmatprep.subr.mxu0 0.0
    %713 = vmatpush1.msra.mxu0 0.0
    %714 = vmatprep.subr.mxu0 0.0
    %715 = vmatpush1.msra.mxu0 0.0
    %716 = vmatprep.subr.mxu0 0.0
    %717 = vmatpush1.msra.mxu0 0.0
    %718 = vmatprep.subr.mxu0 0.0
    %719 = vmatpush1.msra.mxu0 0.0
    %720 = vmatprep.subr.mxu0 0.0
    %721 = vmatpush1.msra.mxu0 0.0
    %722 = vmatprep.subr.mxu0 0.0
    %723 = vmatpush1.msra.mxu0 0.0
    %724 = vmatprep.subr.mxu0 0.0
    %725 = vmatpush1.msra.mxu0 0.0
    %726 = vmatprep.subr.mxu0 0.0
    %727 = vmatpush1.msra.mxu0 0.0
    %728 = vmatprep.subr.mxu0 0.0
    %729 = vmatpush1.msra.mxu0 0.0
    %730 = vmatprep.subr.mxu0 0.0
    %731 = vmatpush1.msra.mxu0 0.0
    %732 = vmatprep.subr.mxu0 0.0
    %733 = vmatpush1.msra.mxu0 0.0
    %734 = vmatprep.subr.mxu0 0.0
    %735 = vmatpush1.msra.mxu0 0.0
    %736 = vmatprep.subr.mxu0 0.0
    %737 = vmatpush1.msra.mxu0 0.0
    %738 = vmatprep.subr.mxu0 0.0
    %739 = vmatpush1.msra.mxu0 0.0
    %740 = vmatprep.subr.mxu0 0.0
    %741 = vmatpush1.msra.mxu0 %v708
    %742 = vmatprep.subr.mxu0 0.0
    %743 = vmatpush2.msra.mxu0 0.0
    %744 = vmatprep.subr.mxu0 0.0
    %745 = vmatpush2.msra.mxu0 0.0
    %746 = vmatprep.subr.mxu0 0.0
    %747 = vmatpush2.msra.mxu0 0.0
    %748 = vmatprep.subr.mxu0 0.0
    %749 = vmatpush2.msra.mxu0 0.0
    %750 = vmatprep.subr.mxu0 0.0
    %751 = vmatpush2.msra.mxu0 0.0
    %752 = vmatprep.subr.mxu0 0.0
    %753 = vmatpush2.msra.mxu0 0.0
    %754 = vmatprep.subr.mxu0 0.0
    %755 = vmatpush2.msra.mxu0 0.0
    %756 = vmatprep.subr.mxu0 0.0
    %757 = vmatpush2.msra.mxu0 0.0
    %758 = vmatprep.subr.mxu0 0.0
    %759 = vmatpush2.msra.mxu0 0.0
    %760 = vmatprep.subr.mxu0 0.0
    %761 = vmatpush2.msra.mxu0 0.0
    %762 = vmatprep.subr.mxu0 0.0
    %763 = vmatpush2.msra.mxu0 0.0
    %764 = vmatprep.subr.mxu0 0.0
    %765 = vmatpush2.msra.mxu0 0.0
    %766 = vmatprep.subr.mxu0 0.0
    %767 = vmatpush2.msra.mxu0 0.0
    %768 = vmatprep.subr.mxu0 0.0
    %769 = vmatpush2.msra.mxu0 0.0
    %770 = vmatprep.subr.mxu0 0.0
    %771 = vmatpush2.msra.mxu0 0.0
    %772 = vmatprep.subr.mxu0 0.0
    %773 = vmatpush2.msra.mxu0 0.0
    %774 = vmatprep.mubr.f32.mxu0 0.0
    %775 = vmatmul.mubr.f32.gmra.mxu0 %v705
    %v776 = vpop.f32.mrf.mxu0
    %v777 = vadd.f32 0.0, %v776
    %v778 = vpop.f32.mrf.mxu0
    %779 = vdwg.mxu0
    %v780 = vadd.f32 %v692, %v777
    %s781 = scalar_lea.vmem %s6, 8
    %v782 = vld [vmem:[%s781] sm:$0x3]
    %v784 = vsel %vm449, %v782, 0
    %v787 = vsel %vm453, %v424, 0
    %789 = vmatprep.subr.mxu0 0.0
    %790 = vmatpush1.msra.mxu0 0.0
    %791 = vmatprep.subr.mxu0 0.0
    %792 = vmatpush1.msra.mxu0 0.0
    %793 = vmatprep.subr.mxu0 0.0
    %794 = vmatpush1.msra.mxu0 0.0
    %795 = vmatprep.subr.mxu0 0.0
    %796 = vmatpush1.msra.mxu0 0.0
    %797 = vmatprep.subr.mxu0 0.0
    %798 = vmatpush1.msra.mxu0 0.0
    %799 = vmatprep.subr.mxu0 0.0
    %800 = vmatpush1.msra.mxu0 0.0
    %801 = vmatprep.subr.mxu0 0.0
    %802 = vmatpush1.msra.mxu0 0.0
    %803 = vmatprep.subr.mxu0 0.0
    %804 = vmatpush1.msra.mxu0 0.0
    %805 = vmatprep.subr.mxu0 0.0
    %806 = vmatpush1.msra.mxu0 0.0
    %807 = vmatprep.subr.mxu0 0.0
    %808 = vmatpush1.msra.mxu0 0.0
    %809 = vmatprep.subr.mxu0 0.0
    %810 = vmatpush1.msra.mxu0 0.0
    %811 = vmatprep.subr.mxu0 0.0
    %812 = vmatpush1.msra.mxu0 0.0
    %813 = vmatprep.subr.mxu0 0.0
    %814 = vmatpush1.msra.mxu0 0.0
    %815 = vmatprep.subr.mxu0 0.0
    %816 = vmatpush1.msra.mxu0 0.0
    %817 = vmatprep.subr.mxu0 0.0
    %818 = vmatpush1.msra.mxu0 0.0
    %819 = vmatprep.subr.mxu0 0.0
    %820 = vmatpush1.msra.mxu0 %v787
    %821 = vmatprep.subr.mxu0 0.0
    %822 = vmatpush2.msra.mxu0 0.0
    %823 = vmatprep.subr.mxu0 0.0
    %824 = vmatpush2.msra.mxu0 0.0
    %825 = vmatprep.subr.mxu0 0.0
    %826 = vmatpush2.msra.mxu0 0.0
    %827 = vmatprep.subr.mxu0 0.0
    %828 = vmatpush2.msra.mxu0 0.0
    %829 = vmatprep.subr.mxu0 0.0
    %830 = vmatpush2.msra.mxu0 0.0
    %831 = vmatprep.subr.mxu0 0.0
    %832 = vmatpush2.msra.mxu0 0.0
    %833 = vmatprep.subr.mxu0 0.0
    %834 = vmatpush2.msra.mxu0 0.0
    %835 = vmatprep.subr.mxu0 0.0
    %836 = vmatpush2.msra.mxu0 0.0
    %837 = vmatprep.subr.mxu0 0.0
    %838 = vmatpush2.msra.mxu0 0.0
    %839 = vmatprep.subr.mxu0 0.0
    %840 = vmatpush2.msra.mxu0 0.0
    %841 = vmatprep.subr.mxu0 0.0
    %842 = vmatpush2.msra.mxu0 0.0
    %843 = vmatprep.subr.mxu0 0.0
    %844 = vmatpush2.msra.mxu0 0.0
    %845 = vmatprep.subr.mxu0 0.0
    %846 = vmatpush2.msra.mxu0 0.0
    %847 = vmatprep.subr.mxu0 0.0
    %848 = vmatpush2.msra.mxu0 0.0
    %849 = vmatprep.subr.mxu0 0.0
    %850 = vmatpush2.msra.mxu0 0.0
    %851 = vmatprep.subr.mxu0 0.0
    %852 = vmatpush2.msra.mxu0 0.0
    %853 = vmatprep.mubr.f32.mxu0 0.0
    %854 = vmatmul.mubr.f32.gmra.mxu0 %v784
    %v855 = vpop.f32.mrf.mxu0
    %v856 = vadd.f32 0.0, %v855
    %v857 = vpop.f32.mrf.mxu0
    %858 = vdwg.mxu0
    %v859 = vadd.f32 %v780, %v856
    %860 = vrot.lane.b32.xlu0 %v424, 127
    %v861 = vpop.permute.xlu0 %860
    %v862 = vsel %vm605, 1, 0
    %v863 = vlaneseq
    %v864 = vshrl.u32 %v863, 7
    %v865 = vsub.s32 0, %v864
    %v866 = vrot.slane %v862, %v865
    %vm867 = vcmp.eq.s32.totalorder %v866, 1
    %v868 = vsel %vm867, %v861, 0.0
    %s869 = scalar_lea.vmem %s6, 10
    %v870 = vld [vmem:[%s869] sm:$0x3]
    %v872 = vsel %vm449, %v870, 0
    %v875 = vsel %vm453, %v868, 0
    %877 = vmatprep.subr.mxu0 0.0
    %878 = vmatpush1.msra.mxu0 0.0
    %879 = vmatprep.subr.mxu0 0.0
    %880 = vmatpush1.msra.mxu0 0.0
    %881 = vmatprep.subr.mxu0 0.0
    %882 = vmatpush1.msra.mxu0 0.0
    %883 = vmatprep.subr.mxu0 0.0
    %884 = vmatpush1.msra.mxu0 0.0
    %885 = vmatprep.subr.mxu0 0.0
    %886 = vmatpush1.msra.mxu0 0.0
    %887 = vmatprep.subr.mxu0 0.0
    %888 = vmatpush1.msra.mxu0 0.0
    %889 = vmatprep.subr.mxu0 0.0
    %890 = vmatpush1.msra.mxu0 0.0
    %891 = vmatprep.subr.mxu0 0.0
    %892 = vmatpush1.msra.mxu0 0.0
    %893 = vmatprep.subr.mxu0 0.0
    %894 = vmatpush1.msra.mxu0 0.0
    %895 = vmatprep.subr.mxu0 0.0
    %896 = vmatpush1.msra.mxu0 0.0
    %897 = vmatprep.subr.mxu0 0.0
    %898 = vmatpush1.msra.mxu0 0.0
    %899 = vmatprep.subr.mxu0 0.0
    %900 = vmatpush1.msra.mxu0 0.0
    %901 = vmatprep.subr.mxu0 0.0
    %902 = vmatpush1.msra.mxu0 0.0
    %903 = vmatprep.subr.mxu0 0.0
    %904 = vmatpush1.msra.mxu0 0.0
    %905 = vmatprep.subr.mxu0 0.0
    %906 = vmatpush1.msra.mxu0 0.0
    %907 = vmatprep.subr.mxu0 0.0
    %908 = vmatpush1.msra.mxu0 %v875
    %909 = vmatprep.subr.mxu0 0.0
    %910 = vmatpush2.msra.mxu0 0.0
    %911 = vmatprep.subr.mxu0 0.0
    %912 = vmatpush2.msra.mxu0 0.0
    %913 = vmatprep.subr.mxu0 0.0
    %914 = vmatpush2.msra.mxu0 0.0
    %915 = vmatprep.subr.mxu0 0.0
    %916 = vmatpush2.msra.mxu0 0.0
    %917 = vmatprep.subr.mxu0 0.0
    %918 = vmatpush2.msra.mxu0 0.0
    %919 = vmatprep.subr.mxu0 0.0
    %920 = vmatpush2.msra.mxu0 0.0
    %921 = vmatprep.subr.mxu0 0.0
    %922 = vmatpush2.msra.mxu0 0.0
    %923 = vmatprep.subr.mxu0 0.0
    %924 = vmatpush2.msra.mxu0 0.0
    %925 = vmatprep.subr.mxu0 0.0
    %926 = vmatpush2.msra.mxu0 0.0
    %927 = vmatprep.subr.mxu0 0.0
    %928 = vmatpush2.msra.mxu0 0.0
    %929 = vmatprep.subr.mxu0 0.0
    %930 = vmatpush2.msra.mxu0 0.0
    %931 = vmatprep.subr.mxu0 0.0
    %932 = vmatpush2.msra.mxu0 0.0
    %933 = vmatprep.subr.mxu0 0.0
    %934 = vmatpush2.msra.mxu0 0.0
    %935 = vmatprep.subr.mxu0 0.0
    %936 = vmatpush2.msra.mxu0 0.0
    %937 = vmatprep.subr.mxu0 0.0
    %938 = vmatpush2.msra.mxu0 0.0
    %939 = vmatprep.subr.mxu0 0.0
    %940 = vmatpush2.msra.mxu0 0.0
    %941 = vmatprep.mubr.f32.mxu0 0.0
    %942 = vmatmul.mubr.f32.gmra.mxu0 %v872
    %v943 = vpop.f32.mrf.mxu0
    %v944 = vadd.f32 0.0, %v943
    %v945 = vpop.f32.mrf.mxu0
    %946 = vdwg.mxu0
    %v947 = vadd.f32 %v859, %v944
    %948 = vrot.lane.b32.xlu0 %v424, 121
    %v949 = vpop.permute.xlu0 %948
    %vm950 = vcmp.lt.s32.totalorder %v59, 7
    %vm951 = vmand %vm950, %vm428
    %v952 = vsel %vm951, 1, 0
    %v953 = vlaneseq
    %v954 = vshrl.u32 %v953, 7
    %v955 = vsub.s32 0, %v954
    %v956 = vrot.slane %v952, %v955
    %vm957 = vcmp.eq.s32.totalorder %v956, 1
    %v958 = vsel %vm957, %v949, 0.0
    %s959 = scalar_lea.vmem %s6, 12
    %v960 = vld [vmem:[%s959] sm:$0x3]
    %v962 = vsel %vm449, %v960, 0
    %v965 = vsel %vm453, %v958, 0
    %967 = vmatprep.subr.mxu0 0.0
    %968 = vmatpush1.msra.mxu0 0.0
    %969 = vmatprep.subr.mxu0 0.0
    %970 = vmatpush1.msra.mxu0 0.0
    %971 = vmatprep.subr.mxu0 0.0
    %972 = vmatpush1.msra.mxu0 0.0
    %973 = vmatprep.subr.mxu0 0.0
    %974 = vmatpush1.msra.mxu0 0.0
    %975 = vmatprep.subr.mxu0 0.0
    %976 = vmatpush1.msra.mxu0 0.0
    %977 = vmatprep.subr.mxu0 0.0
    %978 = vmatpush1.msra.mxu0 0.0
    %979 = vmatprep.subr.mxu0 0.0
    %980 = vmatpush1.msra.mxu0 0.0
    %981 = vmatprep.subr.mxu0 0.0
    %982 = vmatpush1.msra.mxu0 0.0
    %983 = vmatprep.subr.mxu0 0.0
    %984 = vmatpush1.msra.mxu0 0.0
    %985 = vmatprep.subr.mxu0 0.0
    %986 = vmatpush1.msra.mxu0 0.0
    %987 = vmatprep.subr.mxu0 0.0
    %988 = vmatpush1.msra.mxu0 0.0
    %989 = vmatprep.subr.mxu0 0.0
    %990 = vmatpush1.msra.mxu0 0.0
    %991 = vmatprep.subr.mxu0 0.0
    %992 = vmatpush1.msra.mxu0 0.0
    %993 = vmatprep.subr.mxu0 0.0
    %994 = vmatpush1.msra.mxu0 0.0
    %995 = vmatprep.subr.mxu0 0.0
    %996 = vmatpush1.msra.mxu0 0.0
    %997 = vmatprep.subr.mxu0 0.0
    %998 = vmatpush1.msra.mxu0 %v965
    %999 = vmatprep.subr.mxu0 0.0
    %1000 = vmatpush2.msra.mxu0 0.0
    %1001 = vmatprep.subr.mxu0 0.0
    %1002 = vmatpush2.msra.mxu0 0.0
    %1003 = vmatprep.subr.mxu0 0.0
    %1004 = vmatpush2.msra.mxu0 0.0
    %1005 = vmatprep.subr.mxu0 0.0
    %1006 = vmatpush2.msra.mxu0 0.0
    %1007 = vmatprep.subr.mxu0 0.0
    %1008 = vmatpush2.msra.mxu0 0.0
    %1009 = vmatprep.subr.mxu0 0.0
    %1010 = vmatpush2.msra.mxu0 0.0
    %1011 = vmatprep.subr.mxu0 0.0
    %1012 = vmatpush2.msra.mxu0 0.0
    %1013 = vmatprep.subr.mxu0 0.0
    %1014 = vmatpush2.msra.mxu0 0.0
    %1015 = vmatprep.subr.mxu0 0.0
    %1016 = vmatpush2.msra.mxu0 0.0
    %1017 = vmatprep.subr.mxu0 0.0
    %1018 = vmatpush2.msra.mxu0 0.0
    %1019 = vmatprep.subr.mxu0 0.0
    %1020 = vmatpush2.msra.mxu0 0.0
    %1021 = vmatprep.subr.mxu0 0.0
    %1022 = vmatpush2.msra.mxu0 0.0
    %1023 = vmatprep.subr.mxu0 0.0
    %1024 = vmatpush2.msra.mxu0 0.0
    %1025 = vmatprep.subr.mxu0 0.0
    %1026 = vmatpush2.msra.mxu0 0.0
    %1027 = vmatprep.subr.mxu0 0.0
    %1028 = vmatpush2.msra.mxu0 0.0
    %1029 = vmatprep.subr.mxu0 0.0
    %1030 = vmatpush2.msra.mxu0 0.0
    %1031 = vmatprep.mubr.f32.mxu0 0.0
    %1032 = vmatmul.mubr.f32.gmra.mxu0 %v962
    %v1033 = vpop.f32.mrf.mxu0
    %v1034 = vadd.f32 0.0, %v1033
    %v1035 = vpop.f32.mrf.mxu0
    %1036 = vdwg.mxu0
    %v1037 = vadd.f32 %v947, %v1034
    %1038 = vrot.lane.b32.xlu0 %v424, 120
    %v1039 = vpop.permute.xlu0 %1038
    %v1040 = vsel %vm950, 1, 0
    %v1041 = vlaneseq
    %v1042 = vshrl.u32 %v1041, 7
    %v1043 = vsub.s32 0, %v1042
    %v1044 = vrot.slane %v1040, %v1043
    %vm1045 = vcmp.eq.s32.totalorder %v1044, 1
    %v1046 = vsel %vm1045, %v1039, 0.0
    %s1047 = scalar_lea.vmem %s6, 14
    %v1048 = vld [vmem:[%s1047] sm:$0x3]
    %v1050 = vsel %vm449, %v1048, 0
    %v1053 = vsel %vm453, %v1046, 0
    %1055 = vmatprep.subr.mxu0 0.0
    %1056 = vmatpush1.msra.mxu0 0.0
    %1057 = vmatprep.subr.mxu0 0.0
    %1058 = vmatpush1.msra.mxu0 0.0
    %1059 = vmatprep.subr.mxu0 0.0
    %1060 = vmatpush1.msra.mxu0 0.0
    %1061 = vmatprep.subr.mxu0 0.0
    %1062 = vmatpush1.msra.mxu0 0.0
    %1063 = vmatprep.subr.mxu0 0.0
    %1064 = vmatpush1.msra.mxu0 0.0
    %1065 = vmatprep.subr.mxu0 0.0
    %1066 = vmatpush1.msra.mxu0 0.0
    %1067 = vmatprep.subr.mxu0 0.0
    %1068 = vmatpush1.msra.mxu0 0.0
    %1069 = vmatprep.subr.mxu0 0.0
    %1070 = vmatpush1.msra.mxu0 0.0
    %1071 = vmatprep.subr.mxu0 0.0
    %1072 = vmatpush1.msra.mxu0 0.0
    %1073 = vmatprep.subr.mxu0 0.0
    %1074 = vmatpush1.msra.mxu0 0.0
    %1075 = vmatprep.subr.mxu0 0.0
    %1076 = vmatpush1.msra.mxu0 0.0
    %1077 = vmatprep.subr.mxu0 0.0
    %1078 = vmatpush1.msra.mxu0 0.0
    %1079 = vmatprep.subr.mxu0 0.0
    %1080 = vmatpush1.msra.mxu0 0.0
    %1081 = vmatprep.subr.mxu0 0.0
    %1082 = vmatpush1.msra.mxu0 0.0
    %1083 = vmatprep.subr.mxu0 0.0
    %1084 = vmatpush1.msra.mxu0 0.0
    %1085 = vmatprep.subr.mxu0 0.0
    %1086 = vmatpush1.msra.mxu0 %v1053
    %1087 = vmatprep.subr.mxu0 0.0
    %1088 = vmatpush2.msra.mxu0 0.0
    %1089 = vmatprep.subr.mxu0 0.0
    %1090 = vmatpush2.msra.mxu0 0.0
    %1091 = vmatprep.subr.mxu0 0.0
    %1092 = vmatpush2.msra.mxu0 0.0
    %1093 = vmatprep.subr.mxu0 0.0
    %1094 = vmatpush2.msra.mxu0 0.0
    %1095 = vmatprep.subr.mxu0 0.0
    %1096 = vmatpush2.msra.mxu0 0.0
    %1097 = vmatprep.subr.mxu0 0.0
    %1098 = vmatpush2.msra.mxu0 0.0
    %1099 = vmatprep.subr.mxu0 0.0
    %1100 = vmatpush2.msra.mxu0 0.0
    %1101 = vmatprep.subr.mxu0 0.0
    %1102 = vmatpush2.msra.mxu0 0.0
    %1103 = vmatprep.subr.mxu0 0.0
    %1104 = vmatpush2.msra.mxu0 0.0
    %1105 = vmatprep.subr.mxu0 0.0
    %1106 = vmatpush2.msra.mxu0 0.0
    %1107 = vmatprep.subr.mxu0 0.0
    %1108 = vmatpush2.msra.mxu0 0.0
    %1109 = vmatprep.subr.mxu0 0.0
    %1110 = vmatpush2.msra.mxu0 0.0
    %1111 = vmatprep.subr.mxu0 0.0
    %1112 = vmatpush2.msra.mxu0 0.0
    %1113 = vmatprep.subr.mxu0 0.0
    %1114 = vmatpush2.msra.mxu0 0.0
    %1115 = vmatprep.subr.mxu0 0.0
    %1116 = vmatpush2.msra.mxu0 0.0
    %1117 = vmatprep.subr.mxu0 0.0
    %1118 = vmatpush2.msra.mxu0 0.0
    %1119 = vmatprep.mubr.f32.mxu0 0.0
    %1120 = vmatmul.mubr.f32.gmra.mxu0 %v1050
    %v1121 = vpop.f32.mrf.mxu0
    %v1122 = vadd.f32 0.0, %v1121
    %v1123 = vpop.f32.mrf.mxu0
    %1124 = vdwg.mxu0
    %v1125 = vadd.f32 %v1037, %v1122
    %1126 = vrot.lane.b32.xlu0 %v424, 119
    %v1127 = vpop.permute.xlu0 %1126
    %vm1128 = vmand %vm950, %vm605
    %v1129 = vsel %vm1128, 1, 0
    %v1130 = vlaneseq
    %v1131 = vshrl.u32 %v1130, 7
    %v1132 = vsub.s32 0, %v1131
    %v1133 = vrot.slane %v1129, %v1132
    %vm1134 = vcmp.eq.s32.totalorder %v1133, 1
    %v1135 = vsel %vm1134, %v1127, 0.0
    %s1136 = scalar_lea.vmem %s6, 16
    %v1137 = vld [vmem:[%s1136] sm:$0x3]
    %v1139 = vsel %vm449, %v1137, 0
    %v1142 = vsel %vm453, %v1135, 0
    %1144 = vmatprep.subr.mxu0 0.0
    %1145 = vmatpush1.msra.mxu0 0.0
    %1146 = vmatprep.subr.mxu0 0.0
    %1147 = vmatpush1.msra.mxu0 0.0
    %1148 = vmatprep.subr.mxu0 0.0
    %1149 = vmatpush1.msra.mxu0 0.0
    %1150 = vmatprep.subr.mxu0 0.0
    %1151 = vmatpush1.msra.mxu0 0.0
    %1152 = vmatprep.subr.mxu0 0.0
    %1153 = vmatpush1.msra.mxu0 0.0
    %1154 = vmatprep.subr.mxu0 0.0
    %1155 = vmatpush1.msra.mxu0 0.0
    %1156 = vmatprep.subr.mxu0 0.0
    %1157 = vmatpush1.msra.mxu0 0.0
    %1158 = vmatprep.subr.mxu0 0.0
    %1159 = vmatpush1.msra.mxu0 0.0
    %1160 = vmatprep.subr.mxu0 0.0
    %1161 = vmatpush1.msra.mxu0 0.0
    %1162 = vmatprep.subr.mxu0 0.0
    %1163 = vmatpush1.msra.mxu0 0.0
    %1164 = vmatprep.subr.mxu0 0.0
    %1165 = vmatpush1.msra.mxu0 0.0
    %1166 = vmatprep.subr.mxu0 0.0
    %1167 = vmatpush1.msra.mxu0 0.0
    %1168 = vmatprep.subr.mxu0 0.0
    %1169 = vmatpush1.msra.mxu0 0.0
    %1170 = vmatprep.subr.mxu0 0.0
    %1171 = vmatpush1.msra.mxu0 0.0
    %1172 = vmatprep.subr.mxu0 0.0
    %1173 = vmatpush1.msra.mxu0 0.0
    %1174 = vmatprep.subr.mxu0 0.0
    %1175 = vmatpush1.msra.mxu0 %v1142
    %1176 = vmatprep.subr.mxu0 0.0
    %1177 = vmatpush2.msra.mxu0 0.0
    %1178 = vmatprep.subr.mxu0 0.0
    %1179 = vmatpush2.msra.mxu0 0.0
    %1180 = vmatprep.subr.mxu0 0.0
    %1181 = vmatpush2.msra.mxu0 0.0
    %1182 = vmatprep.subr.mxu0 0.0
    %1183 = vmatpush2.msra.mxu0 0.0
    %1184 = vmatprep.subr.mxu0 0.0
    %1185 = vmatpush2.msra.mxu0 0.0
    %1186 = vmatprep.subr.mxu0 0.0
    %1187 = vmatpush2.msra.mxu0 0.0
    %1188 = vmatprep.subr.mxu0 0.0
    %1189 = vmatpush2.msra.mxu0 0.0
    %1190 = vmatprep.subr.mxu0 0.0
    %1191 = vmatpush2.msra.mxu0 0.0
    %1192 = vmatprep.subr.mxu0 0.0
    %1193 = vmatpush2.msra.mxu0 0.0
    %1194 = vmatprep.subr.mxu0 0.0
    %1195 = vmatpush2.msra.mxu0 0.0
    %1196 = vmatprep.subr.mxu0 0.0
    %1197 = vmatpush2.msra.mxu0 0.0
    %1198 = vmatprep.subr.mxu0 0.0
    %1199 = vmatpush2.msra.mxu0 0.0
    %1200 = vmatprep.subr.mxu0 0.0
    %1201 = vmatpush2.msra.mxu0 0.0
    %1202 = vmatprep.subr.mxu0 0.0
    %1203 = vmatpush2.msra.mxu0 0.0
    %1204 = vmatprep.subr.mxu0 0.0
    %1205 = vmatpush2.msra.mxu0 0.0
    %1206 = vmatprep.subr.mxu0 0.0
    %1207 = vmatpush2.msra.mxu0 0.0
    %1208 = vmatprep.mubr.f32.mxu0 0.0
    %1209 = vmatmul.mubr.f32.gmra.mxu0 %v1139
    %v1210 = vpop.f32.mrf.mxu0
    %v1211 = vadd.f32 0.0, %v1210
    %v1212 = vpop.f32.mrf.mxu0
    %1213 = vdwg.mxu0
    %v1214 = vadd.f32 %v1125, %v1211
    %v1215 = vld [vmem:[%s7] sm:$0x3]
    %1217 = vset.pattern.permute.xlu0 0
    %1218 = vperm.xlu0 %1217, %v1215
    %v1219 = vpop.permute.xlu0 %1218
    %v1221 = vadd.f32 %v1214, %v1219
    %vm1222 = vcmp.ge.f32.partialorder %v1221, 0.0
    %v1223 = vstv %s56
    %v1224 = vmul.f32 %v1223, %v1221
    %v1225 = vsel %vm1222, %v1221, %v1224
    %v1226 = vld [vmem:[%s8] sm:$0xff]
    %v1227 = vld [vmem:[%s9] sm:$0xff]
    %1229 = vset.pattern.permute.xlu0 0
    %1230 = vperm.xlu0 %1229, %v1227
    %v1231 = vpop.permute.xlu0 %1230
    %v1234 = vsel %vm449, %v1226, 0
    %v1237 = vsel %vm453, %v1225, 0
    %1239 = vmatprep.subr.mxu0 0.0
    %1240 = vmatpush1.msra.mxu0 0.0
    %1241 = vmatprep.subr.mxu0 0.0
    %1242 = vmatpush1.msra.mxu0 0.0
    %1243 = vmatprep.subr.mxu0 0.0
    %1244 = vmatpush1.msra.mxu0 0.0
    %1245 = vmatprep.subr.mxu0 0.0
    %1246 = vmatpush1.msra.mxu0 0.0
    %1247 = vmatprep.subr.mxu0 0.0
    %1248 = vmatpush1.msra.mxu0 0.0
    %1249 = vmatprep.subr.mxu0 0.0
    %1250 = vmatpush1.msra.mxu0 0.0
    %1251 = vmatprep.subr.mxu0 0.0
    %1252 = vmatpush1.msra.mxu0 0.0
    %1253 = vmatprep.subr.mxu0 0.0
    %1254 = vmatpush1.msra.mxu0 0.0
    %1255 = vmatprep.subr.mxu0 0.0
    %1256 = vmatpush1.msra.mxu0 0.0
    %1257 = vmatprep.subr.mxu0 0.0
    %1258 = vmatpush1.msra.mxu0 0.0
    %1259 = vmatprep.subr.mxu0 0.0
    %1260 = vmatpush1.msra.mxu0 0.0
    %1261 = vmatprep.subr.mxu0 0.0
    %1262 = vmatpush1.msra.mxu0 0.0
    %1263 = vmatprep.subr.mxu0 0.0
    %1264 = vmatpush1.msra.mxu0 0.0
    %1265 = vmatprep.subr.mxu0 0.0
    %1266 = vmatpush1.msra.mxu0 0.0
    %1267 = vmatprep.subr.mxu0 0.0
    %1268 = vmatpush1.msra.mxu0 0.0
    %1269 = vmatprep.subr.mxu0 0.0
    %1270 = vmatpush1.msra.mxu0 %v1237
    %1271 = vmatprep.subr.mxu0 0.0
    %1272 = vmatpush2.msra.mxu0 0.0
    %1273 = vmatprep.subr.mxu0 0.0
    %1274 = vmatpush2.msra.mxu0 0.0
    %1275 = vmatprep.subr.mxu0 0.0
    %1276 = vmatpush2.msra.mxu0 0.0
    %1277 = vmatprep.subr.mxu0 0.0
    %1278 = vmatpush2.msra.mxu0 0.0
    %1279 = vmatprep.subr.mxu0 0.0
    %1280 = vmatpush2.msra.mxu0 0.0
    %1281 = vmatprep.subr.mxu0 0.0
    %1282 = vmatpush2.msra.mxu0 0.0
    %1283 = vmatprep.subr.mxu0 0.0
    %1284 = vmatpush2.msra.mxu0 0.0
    %1285 = vmatprep.subr.mxu0 0.0
    %1286 = vmatpush2.msra.mxu0 0.0
    %1287 = vmatprep.subr.mxu0 0.0
    %1288 = vmatpush2.msra.mxu0 0.0
    %1289 = vmatprep.subr.mxu0 0.0
    %1290 = vmatpush2.msra.mxu0 0.0
    %1291 = vmatprep.subr.mxu0 0.0
    %1292 = vmatpush2.msra.mxu0 0.0
    %1293 = vmatprep.subr.mxu0 0.0
    %1294 = vmatpush2.msra.mxu0 0.0
    %1295 = vmatprep.subr.mxu0 0.0
    %1296 = vmatpush2.msra.mxu0 0.0
    %1297 = vmatprep.subr.mxu0 0.0
    %1298 = vmatpush2.msra.mxu0 0.0
    %1299 = vmatprep.subr.mxu0 0.0
    %1300 = vmatpush2.msra.mxu0 0.0
    %1301 = vmatprep.subr.mxu0 0.0
    %1302 = vmatpush2.msra.mxu0 0.0
    %1303 = vmatprep.mubr.f32.mxu0 0.0
    %1304 = vmatmul.mubr.f32.gmra.mxu0 %v1234
    %v1305 = vpop.f32.mrf.mxu0
    %v1306 = vadd.f32 %v1231, %v1305
    %v1307 = vpop.f32.mrf.mxu0
    %1308 = vdwg.mxu0
    %vm1309 = vcmp.ge.f32.partialorder %v1306, 0.0
    %v1310 = vstv %s57
    %v1311 = vmul.f32 %v1310, %v1306
    %v1312 = vsel %vm1309, %v1306, %v1311
    %v1313 = vld [vmem:[%s10] sm:$0xff]
    %v1315 = vsel %vm102, %v1313, 0
    %v1318 = vsel %vm106, %v92, 0
    %1320 = vmatprep.subr.mxu0 0.0
    %1321 = vmatpush1.msra.mxu0 0.0
    %1322 = vmatprep.subr.mxu0 0.0
    %1323 = vmatpush1.msra.mxu0 0.0
    %1324 = vmatprep.subr.mxu0 0.0
    %1325 = vmatpush1.msra.mxu0 0.0
    %1326 = vmatprep.subr.mxu0 0.0
    %1327 = vmatpush1.msra.mxu0 0.0
    %1328 = vmatprep.subr.mxu0 0.0
    %1329 = vmatpush1.msra.mxu0 0.0
    %1330 = vmatprep.subr.mxu0 0.0
    %1331 = vmatpush1.msra.mxu0 0.0
    %1332 = vmatprep.subr.mxu0 0.0
    %1333 = vmatpush1.msra.mxu0 0.0
    %1334 = vmatprep.subr.mxu0 0.0
    %1335 = vmatpush1.msra.mxu0 0.0
    %1336 = vmatprep.subr.mxu0 0.0
    %1337 = vmatpush1.msra.mxu0 0.0
    %1338 = vmatprep.subr.mxu0 0.0
    %1339 = vmatpush1.msra.mxu0 0.0
    %1340 = vmatprep.subr.mxu0 0.0
    %1341 = vmatpush1.msra.mxu0 0.0
    %1342 = vmatprep.subr.mxu0 0.0
    %1343 = vmatpush1.msra.mxu0 0.0
    %1344 = vmatprep.subr.mxu0 0.0
    %1345 = vmatpush1.msra.mxu0 0.0
    %1346 = vmatprep.subr.mxu0 0.0
    %1347 = vmatpush1.msra.mxu0 0.0
    %1348 = vmatprep.subr.mxu0 0.0
    %1349 = vmatpush1.msra.mxu0 0.0
    %1350 = vmatprep.subr.mxu0 0.0
    %1351 = vmatpush1.msra.mxu0 %v1318
    %1352 = vmatprep.subr.mxu0 0.0
    %1353 = vmatpush2.msra.mxu0 0.0
    %1354 = vmatprep.subr.mxu0 0.0
    %1355 = vmatpush2.msra.mxu0 0.0
    %1356 = vmatprep.subr.mxu0 0.0
    %1357 = vmatpush2.msra.mxu0 0.0
    %1358 = vmatprep.subr.mxu0 0.0
    %1359 = vmatpush2.msra.mxu0 0.0
    %1360 = vmatprep.subr.mxu0 0.0
    %1361 = vmatpush2.msra.mxu0 0.0
    %1362 = vmatprep.subr.mxu0 0.0
    %1363 = vmatpush2.msra.mxu0 0.0
    %1364 = vmatprep.subr.mxu0 0.0
    %1365 = vmatpush2.msra.mxu0 0.0
    %1366 = vmatprep.subr.mxu0 0.0
    %1367 = vmatpush2.msra.mxu0 0.0
    %1368 = vmatprep.subr.mxu0 0.0
    %1369 = vmatpush2.msra.mxu0 0.0
    %1370 = vmatprep.subr.mxu0 0.0
    %1371 = vmatpush2.msra.mxu0 0.0
    %1372 = vmatprep.subr.mxu0 0.0
    %1373 = vmatpush2.msra.mxu0 0.0
    %1374 = vmatprep.subr.mxu0 0.0
    %1375 = vmatpush2.msra.mxu0 0.0
    %1376 = vmatprep.subr.mxu0 0.0
    %1377 = vmatpush2.msra.mxu0 0.0
    %1378 = vmatprep.subr.mxu0 0.0
    %1379 = vmatpush2.msra.mxu0 0.0
    %1380 = vmatprep.subr.mxu0 0.0
    %1381 = vmatpush2.msra.mxu0 0.0
    %1382 = vmatprep.subr.mxu0 0.0
    %1383 = vmatpush2.msra.mxu0 0.0
    %1384 = vmatprep.mubr.f32.mxu0 0.0
    %1385 = vmatmul.mubr.f32.gmra.mxu0 %v1315
    %v1386 = vpop.f32.mrf.mxu0
    %v1387 = vadd.f32 %v1312, %v1386
    %v1388 = vpop.f32.mrf.mxu0
    %1389 = vdwg.mxu0
    %vm1390 = vcmp.ge.f32.partialorder %v1387, 0.0
    %v1391 = vstv %s58
    %v1392 = vmul.f32 %v1391, %v1387
    %v1393 = vsel %vm1390, %v1387, %v1392
    %1394 = vst [vmem:[#allocation5] sm:$0xff] %v1393
    %1395 = vst [vmem:[#allocation6] sm:$0xf] %v98
    // Predicated region
    $region50: #{tpu_custom_call.1} parent=1 // pred_check
      _
    $region51: #{tpu_custom_call.1} parent=1 // pred_check_branch
      %1397 = sbr.rel (0) target = $region53
    $region52: #{tpu_custom_call.1} parent=1 // pred_region
      %s1399 = ssub.s32 128, 128
      %1400 = vsyncadd [#allocation3], %s1399
      %s1402 = sshll.u32 [#allocation5], 4
      %s1403 = int_to_ptr.vmem [resolvable:$true] %s1402
      %1405 = dma.vmem_to_hbm [thread:$0]  %s1403, 128, %s11, [#allocation3]
    $region53: #{tpu_custom_call.1} parent=1 // pred_fallthru
      _
    // Predicated region
    $region54: #{tpu_custom_call.1} parent=1 // pred_check
      _
    $region55: #{tpu_custom_call.1} parent=1 // pred_check_branch
      %1407 = sbr.rel (0) target = $region57
    $region56: #{tpu_custom_call.1} parent=1 // pred_region
      %s1409 = ssub.s32 64, 64
      %1410 = vsyncadd [#allocation7], %s1409
      %s1412 = sshll.u32 [#allocation6], 4
      %s1413 = int_to_ptr.vmem [resolvable:$true] %s1412
      %1415 = dma.vmem_to_hbm [thread:$0]  %s1413, 64, %s12, [#allocation7]
    $region57: #{tpu_custom_call.1} parent=1 // pred_fallthru
      _
    // Predicated region
    $region58: #{tpu_custom_call.1} parent=1 // pred_check
      _
    $region59: #{tpu_custom_call.1} parent=1 // pred_check_branch
      %1417 = sbr.rel (0) target = $region61
    $region60: #{tpu_custom_call.1} parent=1 // pred_region
      %1418 = dma.done [#allocation3], 128
    $region61: #{tpu_custom_call.1} parent=1 // pred_fallthru
      _
    // Predicated region
    $region62: #{tpu_custom_call.1} parent=1 // pred_check
      _
    $region63: #{tpu_custom_call.1} parent=1 // pred_check_branch
      %1420 = sbr.rel (0) target = $region65
    $region64: #{tpu_custom_call.1} parent=1 // pred_region
      %1421 = dma.done [#allocation7], 64
    $region65: #{tpu_custom_call.1} parent=1 // pred_fallthru
      _
    %1422 = vsyncpa [#allocation3], 1
    %1423 = vsyncpa [#allocation7], 1
    %1424 = vsyncpa [#allocation4], 1

</llo_original>
